<compile_context>
chip_gen: v7x
topology: tpu7x:2x2x1
jax: 0.10.0
libtpu: 0.0.40
codegen_flags: <defaults>
</compile_context>

<pallas_src>
import jax
import jax.numpy as jnp
from jax import lax
from jax.experimental import pallas as pl
from jax.experimental.pallas import tpu as pltpu


def _round_up(v, m):
    return (v + m - 1) // m * m


def _pad_channels(c):
    # 16-granule (bf16 pack) padding is legal because the channel block always
    # spans the full padded extent; only go lane-dense (128) once it is not a
    # blow-up.
    return _round_up(c, 16) if c < 128 else _round_up(c, 128)


# --------------------------------------------------------------------------- #
# Kernel
# --------------------------------------------------------------------------- #
def _conv3x3_bn_relu_kernel(x_ref, top_ref, bot_ref, w_ref, b_ref, o_ref,
                            xpad_ref):
    """One (batch, row-tile) grid step.

    x_ref   : (1, TH, W+2, Cin_p)  bf16 body rows (W halo pre-zeroed, channels padded)
    top_ref : (1, 1, W+2, Cin_p)   bf16 row above the tile (index clamped at image top)
    bot_ref : (1, 1, W+2, Cin_p)   bf16 row below the tile (index clamped at image bottom)
    w_ref   : (9, Cin_p, Cout_p)   bf16 weights, BN scale folded in, tap-major
    b_ref   : (1, Cout_p)          f32 folded BN bias
    o_ref   : (1, TH*W, Cout_p)    bf16 output rows, (H, W) flattened to H*W
    xpad_ref: (TH+2, W+2, Cin_p)   bf16 VMEM scratch: tile + 1-row halo
    """
    _, TH, Wp, Cin_p = x_ref.shape
    W = Wp - 2
    h = pl.program_id(1)
    n_h = pl.num_programs(1)

    # Assemble the row-padded slab.  Every write is a full-width aligned row
    # store and the slab is fully rewritten every step -> no persistent-scratch
    # zero-init (safe under megacore sharding) and no redundant interior writes.
    xpad_ref[1:TH + 1] = x_ref[0]

    @pl.when(h > 0)
    def _():
        xpad_ref[0] = top_ref[0, 0]

    @pl.when(h == 0)
    def _():
        xpad_ref[0] = jnp.zeros((Wp, Cin_p), x_ref.dtype)

    @pl.when(h < n_h - 1)
    def _():
        xpad_ref[TH + 1] = bot_ref[0, 0]

    @pl.when(h == n_h - 1)
    def _():
        xpad_ref[TH + 1] = jnp.zeros((Wp, Cin_p), x_ref.dtype)

    # 3x3 conv as nine shifted-window matmuls accumulated in f32 on the MXU.
    # No im2col slab: removes the col-scratch store/reload traffic (the binding
    # vst work at small/medium C); total contracted K (= 9*Cin_p) is unchanged.
    acc = None
    for dh in range(3):
        for dw in range(3):
            tap = xpad_ref[dh:dh + TH, dw:dw + W, :].reshape(TH * W, Cin_p)
            part = jnp.dot(tap, w_ref[dh * 3 + dw],
                           preferred_element_type=jnp.float32)
            acc = part if acc is None else acc + part

    # Folded-BatchNorm bias + ReLU epilogue; lane-dense bf16 store, no reshape.
    o_ref[0] = jnp.maximum(acc + b_ref[...], 0.0).astype(o_ref.dtype)


# --------------------------------------------------------------------------- #
# Tiling / VMEM sizing
# --------------------------------------------------------------------------- #
def _vmem_bytes(th, W, cin_p, cout_p):
    wp = W + 2
    body = th * wp * cin_p * 2
    halo = 2 * wp * cin_p * 2
    wmat = 9 * cin_p * cout_p * 2
    bias = cout_p * 4
    out = th * W * cout_p * 2
    xpad = (th + 2) * wp * cin_p * 2
    acc = th * W * cout_p * 4  # f32 accumulator value (compiler managed)
    # Inputs/outputs are double-buffered by the pipeline; count the grid-invariant
    # weight/bias blocks twice as well to stay conservative.
    return 2 * (body + halo + out + wmat + bias) + xpad + acc


def _pick_tile_rows(H, W, cin_p, cout_p, budget=16 * 1024 * 1024):
    """Largest row tile that divides H, keeps the flattened (TH*W, Cout_p) output
    block sublane-aligned, and fits the smallest scoped-VMEM default (~16 MiB on
    v5e); v6e/v7x simply get the same or a larger tile."""
    valid = [t for t in range(1, H + 1)
             if H % t == 0 and (t == H or (t * W) % 8 == 0)]
    fitting = [t for t in valid if _vmem_bytes(t, W, cin_p, cout_p) <= budget]
    return max(fitting) if fitting else min(valid)


# --------------------------------------------------------------------------- #
# Core (padded-NHWC) entry point
# --------------------------------------------------------------------------- #
def conv3x3_bn_relu_nhwc(x_padded, w_taps, bias_p, *, tile_rows=None,
                         out_dtype=jnp.bfloat16):
    """Fused 3x3 conv (stride 1, pad 1, no bias) + BatchNorm + ReLU.

    x_padded: (N, H, W+2, Cin_p) bf16 NHWC activations (1-px W halo + channel pad
              produced by one pad op, or by the producing layer directly).
    w_taps  : (9, Cin_p, Cout_p) bf16 weights with BN scale folded in.
    bias_p  : (1, Cout_p) f32 folded BN bias.
    Returns (N, H, W, Cout_p) in `out_dtype` (bf16 default).
    """
    N, H, Wp, Cin_p = x_padded.shape
    W = Wp - 2
    Cout_p = w_taps.shape[-1]

    TH = tile_rows if tile_rows is not None else _pick_tile_rows(
        H, W, Cin_p, Cout_p)
    if H % TH != 0 or (TH != H and (TH * W) % 8 != 0):
        raise ValueError(f"invalid tile_rows={TH} for H={H}, W={W}")
    n_h = H // TH

    est = _vmem_bytes(TH, W, Cin_p, Cout_p)
    vmem_limit = min(max(int(1.5 * est) + (4 << 20), 32 << 20), 120 << 20)

    grid_spec = pltpu.PrefetchScalarGridSpec(
        num_scalar_prefetch=0,
        grid=(N, n_h),
        in_specs=[
            # Body rows of this tile.
            pl.BlockSpec((1, TH, Wp, Cin_p), lambda n, h: (n, h, 0, 0)),
            # One-row halos re-read from the neighbouring tiles; the index is
            # clamped at the image border and the kernel overwrites the clamped
            # row with zeros there.
            pl.BlockSpec((1, 1, Wp, Cin_p),
                         lambda n, h: (n, jnp.maximum(h * TH - 1, 0), 0, 0)),
            pl.BlockSpec((1, 1, Wp, Cin_p),
                         lambda n, h: (n, jnp.minimum((h + 1) * TH, H - 1), 0, 0)),
            # Grid-invariant weights / bias: fetched once, resident in VMEM.
            pl.BlockSpec((9, Cin_p, Cout_p), lambda n, h: (0, 0, 0)),
            pl.BlockSpec((1, Cout_p), lambda n, h: (0, 0)),
        ],
        # Flattened spatial output -> straight lane-dense (TH*W, Cout_p) stores.
        out_specs=pl.BlockSpec((1, TH * W, Cout_p), lambda n, h: (n, h, 0)),
        scratch_shapes=[pltpu.VMEM((TH + 2, Wp, Cin_p), x_padded.dtype)],
    )

    out = pl.pallas_call(
        _conv3x3_bn_relu_kernel,
        out_shape=jax.ShapeDtypeStruct((N, H * W, Cout_p), out_dtype),
        grid_spec=grid_spec,
        compiler_params=pltpu.CompilerParams(
            # Both axes independent -> megacore / 2-TC sharding even at N=1.
            dimension_semantics=("parallel", "parallel"),
            vmem_limit_bytes=vmem_limit,
        ),
    )(x_padded, x_padded, x_padded, w_taps, bias_p)

    return out.reshape(N, H, W, Cout_p)


# --------------------------------------------------------------------------- #
# One-time parameter prep (init-time, not per call)
# --------------------------------------------------------------------------- #
def fold_bn_into_conv(w_oihw, gamma, beta, running_mean, running_var, eps,
                      cin_p, cout_p):
    cout, cin = w_oihw.shape[0], w_oihw.shape[1]
    scale = (gamma / jnp.sqrt(running_var + eps)).astype(jnp.float32)
    bias = beta.astype(jnp.float32) - running_mean.astype(jnp.float32) * scale
    w = jnp.transpose(w_oihw.astype(jnp.float32), (2, 3, 1, 0)) * scale  # HWIO
    w = jnp.pad(w, ((0, 0), (0, 0), (0, cin_p - cin), (0, cout_p - cout)))
    w_taps = w.astype(jnp.bfloat16).reshape(9, cin_p, cout_p)
    bias_p = jnp.pad(bias, (0, cout_p - cout)).reshape(1, cout_p)
    return w_taps, bias_p


# --------------------------------------------------------------------------- #
# PyTorch-layout (NCHW) compatibility wrapper for the demo
# --------------------------------------------------------------------------- #
def conv3x3_bn_relu(x_nchw, w_oihw, gamma, beta, running_mean, running_var,
                    eps=2e-5, tile_rows=None):
    """NCHW in / NCHW f32 out wrapper.  In a real network the transposes, pads
    and channel slice below disappear: layers consume/produce channel-padded
    NHWC bf16 directly (each is a full HBM read+write pass)."""
    N, Cin, H, W = x_nchw.shape
    Cout = w_oihw.shape[0]
    Cin_p = _pad_channels(Cin)
    Cout_p = _round_up(Cout, 128)  # lane-dense output stores; not grid-tiled, so
                                   # Cout >= 256 drives a 256-wide MXU N as-is.

    w_taps, bias_p = fold_bn_into_conv(w_oihw, gamma, beta, running_mean,
                                       running_var, eps, Cin_p, Cout_p)

    # Single pad op: the 1-pixel W halo rides along the already-required channel
    # pad, so the kernel never zero-fills the slab interior or side columns.
    x_nhwc = jnp.transpose(x_nchw, (0, 2, 3, 1)).astype(jnp.bfloat16)
    x_padded = jnp.pad(x_nhwc, ((0, 0), (0, 0), (1, 1), (0, Cin_p - Cin)))

    out = conv3x3_bn_relu_nhwc(x_padded, w_taps, bias_p, tile_rows=tile_rows)
    return jnp.transpose(out[..., :Cout], (0, 3, 1, 2)).astype(jnp.float32)


# --------------------------------------------------------------------------- #
# Pure-JAX reference (PyTorch eval-mode semantics)
# --------------------------------------------------------------------------- #
def _reference(x_nchw, w_oihw, gamma, beta, running_mean, running_var, eps=2e-5):
    y = lax.conv_general_dilated(
        x_nchw.astype(jnp.float32), w_oihw.astype(jnp.float32),
        window_strides=(1, 1), padding=((1, 1), (1, 1)),
        dimension_numbers=("NCHW", "OIHW", "NCHW"))
    scale = gamma / jnp.sqrt(running_var + eps)
    bias = beta - running_mean * scale
    y = y * scale[None, :, None, None] + bias[None, :, None, None]
    return jnp.maximum(y, 0.0)


if __name__ == "__main__":
    # Small deterministic example: batch=2, in_channels=4, out_channels=8, 16x16.
    N, Cin, Cout, H, W = 2, 4, 8, 16, 16

    key = jax.random.PRNGKey(0)
    kx, kw, kg, kb, km, kv = jax.random.split(key, 6)

    x = jax.random.normal(kx, (N, Cin, H, W), dtype=jnp.float32)
    w = jax.random.normal(kw, (Cout, Cin, 3, 3), dtype=jnp.float32) * 0.1
    gamma = 1.0 + 0.1 * jax.random.normal(kg, (Cout,), dtype=jnp.float32)
    beta = 0.1 * jax.random.normal(kb, (Cout,), dtype=jnp.float32)
    running_mean = 0.1 * jax.random.normal(km, (Cout,), dtype=jnp.float32)
    running_var = jnp.abs(
        1.0 + 0.1 * jax.random.normal(kv, (Cout,), dtype=jnp.float32))

    ref = _reference(x, w, gamma, beta, running_mean, running_var)

    # Multi-row-tile path: exercises interior tiles, both image borders and the
    # clamped halo-row index maps.
    out_tiled = jax.block_until_ready(
        conv3x3_bn_relu(x, w, gamma, beta, running_mean, running_var,
                        tile_rows=4))
    # Auto-sized tile (whole image per step at this size).
    out_auto = jax.block_until_ready(
        conv3x3_bn_relu(x, w, gamma, beta, running_mean, running_var))

    assert out_tiled.shape == (N, Cout, H, W)
    # bf16 activations/weights on the MXU (f32 accumulation) -> relaxed tolerance.
    assert jnp.allclose(out_tiled, ref, atol=5e-2, rtol=5e-2), "tiled mismatch"
    assert jnp.allclose(out_auto, ref, atol=5e-2, rtol=5e-2), "auto mismatch"

    print("KERNEL_OK")
</pallas_src>

<mosaic_0001>
module attributes {stable_mosaic.version = 11 : i64} {
  func.func @_conv3x3_bn_relu_kernel(%arg0: i32, %arg1: i32, %arg2: memref<1x4x18x16xbf16, #tpu.memory_space<vmem>>, %arg3: memref<1x1x18x16xbf16, #tpu.memory_space<vmem>>, %arg4: memref<1x1x18x16xbf16, #tpu.memory_space<vmem>>, %arg5: memref<9x16x128xbf16, #tpu.memory_space<vmem>>, %arg6: memref<1x128xf32, #tpu.memory_space<vmem>>, %arg7: memref<1x64x128xbf16, #tpu.memory_space<vmem>>, %arg8: memref<6x18x16xbf16, #tpu.memory_space<vmem>>) attributes {dimension_semantics = [#tpu.dimension_semantics<parallel>, #tpu.dimension_semantics<parallel>], iteration_bounds = array<i64: 2, 4>, scalar_prefetch = 0 : i64, scratch_operands = 1 : i64, tpu.core_type = #tpu.core_type<tc>, window_params = [{transform_indices = @transform_0, window_bounds = array<i64: 1, 4, 18, 16>}, {transform_indices = @transform_1, window_bounds = array<i64: 1, 1, 18, 16>}, {transform_indices = @transform_2, window_bounds = array<i64: 1, 1, 18, 16>}, {pipeline_mode = #tpu.pipeline_mode<synchronous>, transform_indices = @transform_3, window_bounds = array<i64: 9, 16, 128>}, {pipeline_mode = #tpu.pipeline_mode<synchronous>, transform_indices = @transform_4, window_bounds = array<i64: 1, 128>}, {transform_indices = @transform_5, window_bounds = array<i64: 1, 64, 128>}]} {
    %c0 = arith.constant 0 : index
    %c0_0 = arith.constant 0 : index
    %c0_1 = arith.constant 0 : index
    %c0_2 = arith.constant 0 : index
    %0 = vector.load %arg2[%c0, %c0_0, %c0_1, %c0_2] : memref<1x4x18x16xbf16, #tpu.memory_space<vmem>>, vector<1x4x18x16xbf16>
    %1 = vector.shape_cast %0 : vector<1x4x18x16xbf16> to vector<4x18x16xbf16>
    %c1 = arith.constant 1 : index
    %c0_3 = arith.constant 0 : index
    %c0_4 = arith.constant 0 : index
    %2 = vector.load %arg8[%c1, %c0_3, %c0_4] : memref<6x18x16xbf16, #tpu.memory_space<vmem>>, vector<4x18x16xbf16>
    tpu.vector_store %arg8[%c1, %c0_3, %c0_4], %1 {strides = array<i32>} : memref<6x18x16xbf16, #tpu.memory_space<vmem>>, vector<4x18x16xbf16>,
    %c0_i32 = arith.constant 0 : i32
    %3 = arith.cmpi sgt, %arg1, %c0_i32 : i32
    %4 = arith.extui %3 : i1 to i32
    %c0_i32_5 = arith.constant 0 : i32
    %5 = arith.cmpi ne, %4, %c0_i32_5 : i32
    scf.if %5 {
      %c0_72 = arith.constant 0 : index
      %c0_73 = arith.constant 0 : index
      %c0_74 = arith.constant 0 : index
      %c0_75 = arith.constant 0 : index
      %77 = vector.load %arg3[%c0_72, %c0_73, %c0_74, %c0_75] : memref<1x1x18x16xbf16, #tpu.memory_space<vmem>>, vector<1x1x18x16xbf16>
      %78 = vector.shape_cast %77 : vector<1x1x18x16xbf16> to vector<18x16xbf16>
      %c0_76 = arith.constant 0 : index
      %c0_77 = arith.constant 0 : index
      %c0_78 = arith.constant 0 : index
      %79 = vector.load %arg8[%c0_76, %c0_77, %c0_78] : memref<6x18x16xbf16, #tpu.memory_space<vmem>>, vector<1x18x16xbf16>
      %80 = vector.shape_cast %79 : vector<1x18x16xbf16> to vector<18x16xbf16>
      %81 = vector.shape_cast %78 : vector<18x16xbf16> to vector<1x18x16xbf16>
      tpu.vector_store %arg8[%c0_76, %c0_77, %c0_78], %81 {strides = array<i32>} : memref<6x18x16xbf16, #tpu.memory_space<vmem>>, vector<1x18x16xbf16>,
    } else {
    }
    %c0_i32_6 = arith.constant 0 : i32
    %6 = arith.cmpi eq, %arg1, %c0_i32_6 : i32
    %7 = arith.extui %6 : i1 to i32
    %c0_i32_7 = arith.constant 0 : i32
    %8 = arith.cmpi ne, %7, %c0_i32_7 : i32
    scf.if %8 {
      %cst_72 = arith.constant 0.000000e+00 : bf16
      %77 = vector.broadcast %cst_72 : bf16 to vector<18x16xbf16>
      %c0_73 = arith.constant 0 : index
      %c0_74 = arith.constant 0 : index
      %c0_75 = arith.constant 0 : index
      %78 = vector.load %arg8[%c0_73, %c0_74, %c0_75] : memref<6x18x16xbf16, #tpu.memory_space<vmem>>, vector<1x18x16xbf16>
      %79 = vector.shape_cast %78 : vector<1x18x16xbf16> to vector<18x16xbf16>
      %80 = vector.shape_cast %77 : vector<18x16xbf16> to vector<1x18x16xbf16>
      tpu.vector_store %arg8[%c0_73, %c0_74, %c0_75], %80 {strides = array<i32>} : memref<6x18x16xbf16, #tpu.memory_space<vmem>>, vector<1x18x16xbf16>,
    } else {
    }
    %c3_i32 = arith.constant 3 : i32
    %9 = arith.cmpi slt, %arg1, %c3_i32 : i32
    %10 = arith.extui %9 : i1 to i32
    %c0_i32_8 = arith.constant 0 : i32
    %11 = arith.cmpi ne, %10, %c0_i32_8 : i32
    scf.if %11 {
      %c0_72 = arith.constant 0 : index
      %c0_73 = arith.constant 0 : index
      %c0_74 = arith.constant 0 : index
      %c0_75 = arith.constant 0 : index
      %77 = vector.load %arg4[%c0_72, %c0_73, %c0_74, %c0_75] : memref<1x1x18x16xbf16, #tpu.memory_space<vmem>>, vector<1x1x18x16xbf16>
      %78 = vector.shape_cast %77 : vector<1x1x18x16xbf16> to vector<18x16xbf16>
      %c5_76 = arith.constant 5 : index
      %c0_77 = arith.constant 0 : index
      %c0_78 = arith.constant 0 : index
      %79 = vector.load %arg8[%c5_76, %c0_77, %c0_78] : memref<6x18x16xbf16, #tpu.memory_space<vmem>>, vector<1x18x16xbf16>
      %80 = vector.shape_cast %79 : vector<1x18x16xbf16> to vector<18x16xbf16>
      %81 = vector.shape_cast %78 : vector<18x16xbf16> to vector<1x18x16xbf16>
      tpu.vector_store %arg8[%c5_76, %c0_77, %c0_78], %81 {strides = array<i32>} : memref<6x18x16xbf16, #tpu.memory_space<vmem>>, vector<1x18x16xbf16>,
    } else {
    }
    %c3_i32_9 = arith.constant 3 : i32
    %12 = arith.cmpi eq, %arg1, %c3_i32_9 : i32
    %13 = arith.extui %12 : i1 to i32
    %c0_i32_10 = arith.constant 0 : i32
    %14 = arith.cmpi ne, %13, %c0_i32_10 : i32
    scf.if %14 {
      %cst_72 = arith.constant 0.000000e+00 : bf16
      %77 = vector.broadcast %cst_72 : bf16 to vector<18x16xbf16>
      %c5_73 = arith.constant 5 : index
      %c0_74 = arith.constant 0 : index
      %c0_75 = arith.constant 0 : index
      %78 = vector.load %arg8[%c5_73, %c0_74, %c0_75] : memref<6x18x16xbf16, #tpu.memory_space<vmem>>, vector<1x18x16xbf16>
      %79 = vector.shape_cast %78 : vector<1x18x16xbf16> to vector<18x16xbf16>
      %80 = vector.shape_cast %77 : vector<18x16xbf16> to vector<1x18x16xbf16>
      tpu.vector_store %arg8[%c5_73, %c0_74, %c0_75], %80 {strides = array<i32>} : memref<6x18x16xbf16, #tpu.memory_space<vmem>>, vector<1x18x16xbf16>,
    } else {
    }
    %c0_11 = arith.constant 0 : index
    %c0_12 = arith.constant 0 : index
    %c0_13 = arith.constant 0 : index
    %15 = vector.load %arg8[%c0_11, %c0_12, %c0_13] : memref<6x18x16xbf16, #tpu.memory_space<vmem>>, vector<4x16x16xbf16>
    %16 = vector.shape_cast %15 : vector<4x16x16xbf16> to vector<64x16xbf16>
    %c0_14 = arith.constant 0 : index
    %c0_15 = arith.constant 0 : index
    %c0_16 = arith.constant 0 : index
    %17 = vector.load %arg5[%c0_14, %c0_15, %c0_16] : memref<9x16x128xbf16, #tpu.memory_space<vmem>>, vector<1x16x128xbf16>
    %18 = vector.shape_cast %17 : vector<1x16x128xbf16> to vector<16x128xbf16>
    %cst = arith.constant dense<0.000000e+00> : vector<64x128xf32>
    %19 = tpu.matmul %16, %18, %cst {dimension_numbers = #tpu.dot_dimension_numbers<[1], [0], [0], [1], [0, 0, 1, 1], [], []>} : vector<64x16xbf16>, vector<16x128xbf16>, vector<64x128xf32> -> vector<64x128xf32>
    %c0_17 = arith.constant 0 : index
    %c1_18 = arith.constant 1 : index
    %c0_19 = arith.constant 0 : index
    %20 = vector.load %arg8[%c0_17, %c1_18, %c0_19] : memref<6x18x16xbf16, #tpu.memory_space<vmem>>, vector<4x16x16xbf16>
    %21 = vector.shape_cast %20 : vector<4x16x16xbf16> to vector<64x16xbf16>
    %c1_20 = arith.constant 1 : index
    %c0_21 = arith.constant 0 : index
    %c0_22 = arith.constant 0 : index
    %22 = vector.load %arg5[%c1_20, %c0_21, %c0_22] : memref<9x16x128xbf16, #tpu.memory_space<vmem>>, vector<1x16x128xbf16>
    %23 = vector.shape_cast %22 : vector<1x16x128xbf16> to vector<16x128xbf16>
    %cst_23 = arith.constant dense<0.000000e+00> : vector<64x128xf32>
    %24 = tpu.matmul %21, %23, %cst_23 {dimension_numbers = #tpu.dot_dimension_numbers<[1], [0], [0], [1], [0, 0, 1, 1], [], []>} : vector<64x16xbf16>, vector<16x128xbf16>, vector<64x128xf32> -> vector<64x128xf32>
    %25 = arith.addf %19, %24 : vector<64x128xf32>
    %c0_24 = arith.constant 0 : index
    %c2 = arith.constant 2 : index
    %c0_25 = arith.constant 0 : index
    %26 = vector.load %arg8[%c0_24, %c2, %c0_25] : memref<6x18x16xbf16, #tpu.memory_space<vmem>>, vector<4x16x16xbf16>
    %27 = vector.shape_cast %26 : vector<4x16x16xbf16> to vector<64x16xbf16>
    %c2_26 = arith.constant 2 : index
    %c0_27 = arith.constant 0 : index
    %c0_28 = arith.constant 0 : index
    %28 = vector.load %arg5[%c2_26, %c0_27, %c0_28] : memref<9x16x128xbf16, #tpu.memory_space<vmem>>, vector<1x16x128xbf16>
    %29 = vector.shape_cast %28 : vector<1x16x128xbf16> to vector<16x128xbf16>
    %cst_29 = arith.constant dense<0.000000e+00> : vector<64x128xf32>
    %30 = tpu.matmul %27, %29, %cst_29 {dimension_numbers = #tpu.dot_dimension_numbers<[1], [0], [0], [1], [0, 0, 1, 1], [], []>} : vector<64x16xbf16>, vector<16x128xbf16>, vector<64x128xf32> -> vector<64x128xf32>
    %31 = arith.addf %25, %30 : vector<64x128xf32>
    %c1_30 = arith.constant 1 : index
    %c0_31 = arith.constant 0 : index
    %c0_32 = arith.constant 0 : index
    %32 = vector.load %arg8[%c1_30, %c0_31, %c0_32] : memref<6x18x16xbf16, #tpu.memory_space<vmem>>, vector<4x16x16xbf16>
    %33 = vector.shape_cast %32 : vector<4x16x16xbf16> to vector<64x16xbf16>
    %c3 = arith.constant 3 : index
    %c0_33 = arith.constant 0 : index
    %c0_34 = arith.constant 0 : index
    %34 = vector.load %arg5[%c3, %c0_33, %c0_34] : memref<9x16x128xbf16, #tpu.memory_space<vmem>>, vector<1x16x128xbf16>
    %35 = vector.shape_cast %34 : vector<1x16x128xbf16> to vector<16x128xbf16>
    %cst_35 = arith.constant dense<0.000000e+00> : vector<64x128xf32>
    %36 = tpu.matmul %33, %35, %cst_35 {dimension_numbers = #tpu.dot_dimension_numbers<[1], [0], [0], [1], [0, 0, 1, 1], [], []>} : vector<64x16xbf16>, vector<16x128xbf16>, vector<64x128xf32> -> vector<64x128xf32>
    %37 = arith.addf %31, %36 : vector<64x128xf32>
    %c1_36 = arith.constant 1 : index
    %c1_37 = arith.constant 1 : index
    %c0_38 = arith.constant 0 : index
    %38 = vector.load %arg8[%c1_36, %c1_37, %c0_38] : memref<6x18x16xbf16, #tpu.memory_space<vmem>>, vector<4x16x16xbf16>
    %39 = vector.shape_cast %38 : vector<4x16x16xbf16> to vector<64x16xbf16>
    %c4 = arith.constant 4 : index
    %c0_39 = arith.constant 0 : index
    %c0_40 = arith.constant 0 : index
    %40 = vector.load %arg5[%c4, %c0_39, %c0_40] : memref<9x16x128xbf16, #tpu.memory_space<vmem>>, vector<1x16x128xbf16>
    %41 = vector.shape_cast %40 : vector<1x16x128xbf16> to vector<16x128xbf16>
    %cst_41 = arith.constant dense<0.000000e+00> : vector<64x128xf32>
    %42 = tpu.matmul %39, %41, %cst_41 {dimension_numbers = #tpu.dot_dimension_numbers<[1], [0], [0], [1], [0, 0, 1, 1], [], []>} : vector<64x16xbf16>, vector<16x128xbf16>, vector<64x128xf32> -> vector<64x128xf32>
    %43 = arith.addf %37, %42 : vector<64x128xf32>
    %c1_42 = arith.constant 1 : index
    %c2_43 = arith.constant 2 : index
    %c0_44 = arith.constant 0 : index
    %44 = vector.load %arg8[%c1_42, %c2_43, %c0_44] : memref<6x18x16xbf16, #tpu.memory_space<vmem>>, vector<4x16x16xbf16>
    %45 = vector.shape_cast %44 : vector<4x16x16xbf16> to vector<64x16xbf16>
    %c5 = arith.constant 5 : index
    %c0_45 = arith.constant 0 : index
    %c0_46 = arith.constant 0 : index
    %46 = vector.load %arg5[%c5, %c0_45, %c0_46] : memref<9x16x128xbf16, #tpu.memory_space<vmem>>, vector<1x16x128xbf16>
    %47 = vector.shape_cast %46 : vector<1x16x128xbf16> to vector<16x128xbf16>
    %cst_47 = arith.constant dense<0.000000e+00> : vector<64x128xf32>
    %48 = tpu.matmul %45, %47, %cst_47 {dimension_numbers = #tpu.dot_dimension_numbers<[1], [0], [0], [1], [0, 0, 1, 1], [], []>} : vector<64x16xbf16>, vector<16x128xbf16>, vector<64x128xf32> -> vector<64x128xf32>
    %49 = arith.addf %43, %48 : vector<64x128xf32>
    %c2_48 = arith.constant 2 : index
    %c0_49 = arith.constant 0 : index
    %c0_50 = arith.constant 0 : index
    %50 = vector.load %arg8[%c2_48, %c0_49, %c0_50] : memref<6x18x16xbf16, #tpu.memory_space<vmem>>, vector<4x16x16xbf16>
    %51 = vector.shape_cast %50 : vector<4x16x16xbf16> to vector<64x16xbf16>
    %c6 = arith.constant 6 : index
    %c0_51 = arith.constant 0 : index
    %c0_52 = arith.constant 0 : index
    %52 = vector.load %arg5[%c6, %c0_51, %c0_52] : memref<9x16x128xbf16, #tpu.memory_space<vmem>>, vector<1x16x128xbf16>
    %53 = vector.shape_cast %52 : vector<1x16x128xbf16> to vector<16x128xbf16>
    %cst_53 = arith.constant dense<0.000000e+00> : vector<64x128xf32>
    %54 = tpu.matmul %51, %53, %cst_53 {dimension_numbers = #tpu.dot_dimension_numbers<[1], [0], [0], [1], [0, 0, 1, 1], [], []>} : vector<64x16xbf16>, vector<16x128xbf16>, vector<64x128xf32> -> vector<64x128xf32>
    %55 = arith.addf %49, %54 : vector<64x128xf32>
    %c2_54 = arith.constant 2 : index
    %c1_55 = arith.constant 1 : index
    %c0_56 = arith.constant 0 : index
    %56 = vector.load %arg8[%c2_54, %c1_55, %c0_56] : memref<6x18x16xbf16, #tpu.memory_space<vmem>>, vector<4x16x16xbf16>
    %57 = vector.shape_cast %56 : vector<4x16x16xbf16> to vector<64x16xbf16>
    %c7 = arith.constant 7 : index
    %c0_57 = arith.constant 0 : index
    %c0_58 = arith.constant 0 : index
    %58 = vector.load %arg5[%c7, %c0_57, %c0_58] : memref<9x16x128xbf16, #tpu.memory_space<vmem>>, vector<1x16x128xbf16>
    %59 = vector.shape_cast %58 : vector<1x16x128xbf16> to vector<16x128xbf16>
    %cst_59 = arith.constant dense<0.000000e+00> : vector<64x128xf32>
    %60 = tpu.matmul %57, %59, %cst_59 {dimension_numbers = #tpu.dot_dimension_numbers<[1], [0], [0], [1], [0, 0, 1, 1], [], []>} : vector<64x16xbf16>, vector<16x128xbf16>, vector<64x128xf32> -> vector<64x128xf32>
    %61 = arith.addf %55, %60 : vector<64x128xf32>
    %c2_60 = arith.constant 2 : index
    %c2_61 = arith.constant 2 : index
    %c0_62 = arith.constant 0 : index
    %62 = vector.load %arg8[%c2_60, %c2_61, %c0_62] : memref<6x18x16xbf16, #tpu.memory_space<vmem>>, vector<4x16x16xbf16>
    %63 = vector.shape_cast %62 : vector<4x16x16xbf16> to vector<64x16xbf16>
    %c8 = arith.constant 8 : index
    %c0_63 = arith.constant 0 : index
    %c0_64 = arith.constant 0 : index
    %64 = vector.load %arg5[%c8, %c0_63, %c0_64] : memref<9x16x128xbf16, #tpu.memory_space<vmem>>, vector<1x16x128xbf16>
    %65 = vector.shape_cast %64 : vector<1x16x128xbf16> to vector<16x128xbf16>
    %cst_65 = arith.constant dense<0.000000e+00> : vector<64x128xf32>
    %66 = tpu.matmul %63, %65, %cst_65 {dimension_numbers = #tpu.dot_dimension_numbers<[1], [0], [0], [1], [0, 0, 1, 1], [], []>} : vector<64x16xbf16>, vector<16x128xbf16>, vector<64x128xf32> -> vector<64x128xf32>
    %67 = arith.addf %61, %66 : vector<64x128xf32>
    %c0_66 = arith.constant 0 : index
    %c0_67 = arith.constant 0 : index
    %68 = vector.load %arg6[%c0_66, %c0_67] : memref<1x128xf32, #tpu.memory_space<vmem>>, vector<1x128xf32>
    %69 = vector.broadcast %68 : vector<1x128xf32> to vector<64x128xf32>
    %70 = arith.addf %67, %69 : vector<64x128xf32>
    %cst_68 = arith.constant 0.000000e+00 : f32
    %71 = vector.broadcast %cst_68 : f32 to vector<64x128xf32>
    %72 = arith.maximumf %70, %71 : vector<64x128xf32>
    %73 = arith.truncf %72 : vector<64x128xf32> to vector<64x128xbf16>
    %c0_69 = arith.constant 0 : index
    %c0_70 = arith.constant 0 : index
    %c0_71 = arith.constant 0 : index
    %74 = vector.load %arg7[%c0_69, %c0_70, %c0_71] : memref<1x64x128xbf16, #tpu.memory_space<vmem>>, vector<1x64x128xbf16>
    %75 = vector.shape_cast %74 : vector<1x64x128xbf16> to vector<64x128xbf16>
    %76 = vector.shape_cast %73 : vector<64x128xbf16> to vector<1x64x128xbf16>
    tpu.vector_store %arg7[%c0_69, %c0_70, %c0_71], %76 {strides = array<i32>} : memref<1x64x128xbf16, #tpu.memory_space<vmem>>, vector<1x64x128xbf16>,
    return
  }
  func.func @transform_0(%arg0: i32, %arg1: i32) -> (i32, i32, i32, i32) {
    %c0_i32 = arith.constant 0 : i32
    %c0_i32_0 = arith.constant 0 : i32
    %c0_i32_1 = arith.constant 0 : i32
    return %arg0, %arg1, %c0_i32, %c0_i32_0 : i32, i32, i32, i32
  }
  func.func @transform_1(%arg0: i32, %arg1: i32) -> (i32, i32, i32, i32) {
    %c4_i32 = arith.constant 4 : i32
    %0 = arith.muli %arg1, %c4_i32 : i32
    %c1_i32 = arith.constant 1 : i32
    %1 = arith.subi %0, %c1_i32 : i32
    %c0_i32 = arith.constant 0 : i32
    %2 = arith.maxsi %1, %c0_i32 : i32
    %c0_i32_0 = arith.constant 0 : i32
    %c0_i32_1 = arith.constant 0 : i32
    %c0_i32_2 = arith.constant 0 : i32
    return %arg0, %2, %c0_i32_0, %c0_i32_1 : i32, i32, i32, i32
  }
  func.func @transform_2(%arg0: i32, %arg1: i32) -> (i32, i32, i32, i32) {
    %c1_i32 = arith.constant 1 : i32
    %0 = arith.addi %arg1, %c1_i32 : i32
    %c4_i32 = arith.constant 4 : i32
    %1 = arith.muli %0, %c4_i32 : i32
    %c15_i32 = arith.constant 15 : i32
    %2 = arith.minsi %1, %c15_i32 : i32
    %c0_i32 = arith.constant 0 : i32
    %c0_i32_0 = arith.constant 0 : i32
    %c0_i32_1 = arith.constant 0 : i32
    return %arg0, %2, %c0_i32, %c0_i32_0 : i32, i32, i32, i32
  }
  func.func @transform_3(%arg0: i32, %arg1: i32) -> (i32, i32, i32) {
    %c0_i32 = arith.constant 0 : i32
    %c0_i32_0 = arith.constant 0 : i32
    %c0_i32_1 = arith.constant 0 : i32
    %c0_i32_2 = arith.constant 0 : i32
    return %c0_i32, %c0_i32_0, %c0_i32_1 : i32, i32, i32
  }
  func.func @transform_4(%arg0: i32, %arg1: i32) -> (i32, i32) {
    %c0_i32 = arith.constant 0 : i32
    %c0_i32_0 = arith.constant 0 : i32
    %c0_i32_1 = arith.constant 0 : i32
    return %c0_i32, %c0_i32_0 : i32, i32
  }
  func.func @transform_5(%arg0: i32, %arg1: i32) -> (i32, i32, i32) {
    %c0_i32 = arith.constant 0 : i32
    %c0_i32_0 = arith.constant 0 : i32
    return %arg0, %arg1, %c0_i32 : i32, i32, i32
  }
}

</mosaic_0001>

<llo_original>
// kernel: tpu_custom_call.1
$region0: #{tpu_custom_call.1}
  #allocation0 [shape = 'u32[]', space=smem, size = 0x4, offset = 0x4, fixed_abs, tag = 'smem constant byte address 0x4 - core index']
  #allocation1 [shape = 'u32[144,128]{1,0:T(1,128)}', space=vmem, size = 0x12000, scoped, tag = 'internal scratch']
  #allocation2 [shape = 'bf16[6,18,16]{2,1,0:T(8,128)(2,1)}', space=vmem, size = 0x9000, scoped, tag = 'scratch operand']
  %s0 = inlined_call_operand.vmem [shape: bf16[2,16,18,16], index: 0, kind: input, shape index: {}]
  %s1 = inlined_call_operand.vmem [shape: bf16[2,16,18,16], index: 1, kind: input, shape index: {}]
  %s2 = inlined_call_operand.vmem [shape: bf16[2,16,18,16], index: 2, kind: input, shape index: {}]
  %s3 = inlined_call_operand.vmem [shape: bf16[9,16,128], index: 3, kind: input, shape index: {}]
  %s4 = inlined_call_operand.vmem [shape: f32[1,128], index: 4, kind: input, shape index: {}]
  %s5 = inlined_call_operand.hbm [shape: bf16[2,256,128], index: 5, kind: output, shape index: {}]
  %s6 = sld [smem:[#allocation0]]
  $region69: #{tpu_custom_call.1} parent=0
    _
  %s8 = ssub.s32 1, %s6
  %s9 = scalar_select 0, %s8, %s6
  $region1: #{tpu_custom_call.1} parent=0
    #allocation3 [shape = 'u8[32768]{0}', space=vmem, size = 0x8000, scoped, tag = 'output window, operand 0']
    #allocation4 [shape = 's32[2]{0}', space=sflag, size = 0x8, scoped, tag = 'scoped memory for tpu_custom_call.1']
    %10 = vsyncpa [#allocation4], 0
    %s11 = scalar_lea.sflag [#allocation4], 1
    %12 = vsyncpa %s11, 0
    loop: start=0, step=1, limit=10
    $region2: #{tpu_custom_call.1} parent=1 // loop_pre_header
      _
    $region3: #{tpu_custom_call.1} parent=1 // loop_header
      %s14 = sphi 0, %s18
      %p15 = scmp.ge.s32.totalorder %s14, 10
      %s21 = sphi 0, %s33
      %s22 = sphi 0, %s29
      %s23 = sphi 0, %s21
      %s24 = sphi 0, %s22
      %s25 = sphi 0, %s23
      %s26 = sphi 0, %s24
      %s38 = sphi 0, %s40
      %s41 = sphi 0, %s38
      %s42 = sphi 0, %s41
      %s58 = sphi 0, %s42
      %s74 = sphi 0, %s76
      %s77 = sphi 0, %s74
      %s78 = sphi 0, %s77
      %s94 = sphi 0, %s78
      %s110 = sphi 0, %s112
      %s113 = sphi 0, %s110
      %s114 = sphi 0, %s113
      %s130 = sphi 0, %s114
      %s134 = sphi 0, %s134
      %s136 = sphi 0, %s134
      %s137 = sphi 0, %s136
      %s151 = sphi 0, %s137
      %s155 = sphi 0, %s155
      %s157 = sphi 0, %s155
      %s158 = sphi 0, %s157
      %s172 = sphi 0, %s158
      %s180 = sphi 0, %s182
      %s183 = sphi 0, %s180
      %s184 = sphi 0, %s183
      %s200 = sphi 0, %s184
    $region4: #{tpu_custom_call.1} parent=1 // loop_header_branch
      %17 = sbr.rel (%p15) target = $region8
    $region5: #{tpu_custom_call.1} parent=1 // loop_body
      %s19 = ssub.s32 %s14, 1
      %s20 = ssub.s32 %s14, 2
      %s27 = sadd.s32 1, %s22
      %p28 = scmp.ge.s32.totalorder %s27, 4
      %s29 = scalar_select %p28, 0, %s27
      %s30 = sadd.s32 1, %s21
      %s31 = scalar_select %p28, %s30, %s21
      %p32 = scmp.ge.s32.totalorder %s31, 2
      %s33 = scalar_select %p32, 0, %s31
      %s34 = ssub.s32 %s21, %s33
      %s35 = ssub.s32 %s22, %s29
      %s36 = sor.u32 %s34, %s35
      %p37 = scmp.eq.s32.totalorder %s36, 0
      %s39 = sadd.s32 %s38, 1
      %s40 = scalar_select %p37, %s38, %s39
      %p43 = pneg %p37
      %p44 = scmp.eq.s32.totalorder %s14, 7
      %p45 = por %p43, %p44
      %p46 = scmp.ne.s32.totalorder %s38, %s41
      %p47 = scmp.eq.s32.totalorder %s14, 0
      %p48 = por %p46, %p47
      %p49 = scmp.ne.s32.totalorder %s38, %s41
      %p50 = scmp.eq.s32.totalorder %s19, 7
      %p51 = por %p49, %p50
      %p52 = scmp.ne.s32.totalorder %s41, %s42
      %p53 = scmp.eq.s32.totalorder %s19, 0
      %p54 = por %p52, %p53
      %p55 = scmp.ne.s32.totalorder %s41, %s42
      %p56 = scmp.eq.s32.totalorder %s20, 7
      %p57 = por %p55, %p56
      %p59 = scmp.ne.s32.totalorder %s42, %s58
      %p60 = scmp.eq.s32.totalorder %s20, 0
      %p61 = por %p59, %p60
      %s62 = smul.u32 %s22, 4
      %s63 = ssub.s32 %s62, 1
      %p64 = scmp.gt.s32.totalorder %s63, 0
      %s65 = scalar_select %p64, %s63, 0
      %s66 = smul.u32 %s29, 4
      %s67 = ssub.s32 %s66, 1
      %p68 = scmp.gt.s32.totalorder %s67, 0
      %s69 = scalar_select %p68, %s67, 0
      %s70 = ssub.s32 %s21, %s33
      %s71 = ssub.s32 %s65, %s69
      %s72 = sor.u32 %s70, %s71
      %p73 = scmp.eq.s32.totalorder %s72, 0
      %s75 = sadd.s32 %s74, 1
      %s76 = scalar_select %p73, %s74, %s75
      %p79 = pneg %p73
      %p80 = scmp.eq.s32.totalorder %s14, 7
      %p81 = por %p79, %p80
      %p82 = scmp.ne.s32.totalorder %s74, %s77
      %p83 = scmp.eq.s32.totalorder %s14, 0
      %p84 = por %p82, %p83
      %p85 = scmp.ne.s32.totalorder %s74, %s77
      %p86 = scmp.eq.s32.totalorder %s19, 7
      %p87 = por %p85, %p86
      %p88 = scmp.ne.s32.totalorder %s77, %s78
      %p89 = scmp.eq.s32.totalorder %s19, 0
      %p90 = por %p88, %p89
      %p91 = scmp.ne.s32.totalorder %s77, %s78
      %p92 = scmp.eq.s32.totalorder %s20, 7
      %p93 = por %p91, %p92
      %p95 = scmp.ne.s32.totalorder %s78, %s94
      %p96 = scmp.eq.s32.totalorder %s20, 0
      %p97 = por %p95, %p96
      %s98 = sadd.s32 %s22, 1
      %s99 = smul.u32 %s98, 4
      %p100 = scmp.lt.s32.totalorder %s99, 15
      %s101 = scalar_select %p100, %s99, 15
      %s102 = sadd.s32 %s29, 1
      %s103 = smul.u32 %s102, 4
      %p104 = scmp.lt.s32.totalorder %s103, 15
      %s105 = scalar_select %p104, %s103, 15
      %s106 = ssub.s32 %s21, %s33
      %s107 = ssub.s32 %s101, %s105
      %s108 = sor.u32 %s106, %s107
      %p109 = scmp.eq.s32.totalorder %s108, 0
      %s111 = sadd.s32 %s110, 1
      %s112 = scalar_select %p109, %s110, %s111
      %p115 = pneg %p109
      %p116 = scmp.eq.s32.totalorder %s14, 7
      %p117 = por %p115, %p116
      %p118 = scmp.ne.s32.totalorder %s110, %s113
      %p119 = scmp.eq.s32.totalorder %s14, 0
      %p120 = por %p118, %p119
      %p121 = scmp.ne.s32.totalorder %s110, %s113
      %p122 = scmp.eq.s32.totalorder %s19, 7
      %p123 = por %p121, %p122
      %p124 = scmp.ne.s32.totalorder %s113, %s114
      %p125 = scmp.eq.s32.totalorder %s19, 0
      %p126 = por %p124, %p125
      %p127 = scmp.ne.s32.totalorder %s113, %s114
      %p128 = scmp.eq.s32.totalorder %s20, 7
      %p129 = por %p127, %p128
      %p131 = scmp.ne.s32.totalorder %s114, %s130
      %p132 = scmp.eq.s32.totalorder %s20, 0
      %p133 = por %p131, %p132
      %s135 = sadd.s32 %s134, 1
      %p138 = scmp.eq.s32.totalorder %s14, 7
      %p139 = scmp.ne.s32.totalorder %s134, %s136
      %p140 = scmp.eq.s32.totalorder %s14, 0
      %p141 = por %p139, %p140
      %p142 = scmp.ne.s32.totalorder %s134, %s136
      %p143 = scmp.eq.s32.totalorder %s19, 7
      %p144 = por %p142, %p143
      %p145 = scmp.ne.s32.totalorder %s136, %s137
      %p146 = scmp.eq.s32.totalorder %s19, 0
      %p147 = por %p145, %p146
      %p148 = scmp.ne.s32.totalorder %s136, %s137
      %p149 = scmp.eq.s32.totalorder %s20, 7
      %p150 = por %p148, %p149
      %p152 = scmp.ne.s32.totalorder %s137, %s151
      %p153 = scmp.eq.s32.totalorder %s20, 0
      %p154 = por %p152, %p153
      %s156 = sadd.s32 %s155, 1
      %p159 = scmp.eq.s32.totalorder %s14, 7
      %p160 = scmp.ne.s32.totalorder %s155, %s157
      %p161 = scmp.eq.s32.totalorder %s14, 0
      %p162 = por %p160, %p161
      %p163 = scmp.ne.s32.totalorder %s155, %s157
      %p164 = scmp.eq.s32.totalorder %s19, 7
      %p165 = por %p163, %p164
      %p166 = scmp.ne.s32.totalorder %s157, %s158
      %p167 = scmp.eq.s32.totalorder %s19, 0
      %p168 = por %p166, %p167
      %p169 = scmp.ne.s32.totalorder %s157, %s158
      %p170 = scmp.eq.s32.totalorder %s20, 7
      %p171 = por %p169, %p170
      %p173 = scmp.ne.s32.totalorder %s158, %s172
      %p174 = scmp.eq.s32.totalorder %s20, 0
      %p175 = por %p173, %p174
      %s176 = ssub.s32 %s21, %s33
      %s177 = ssub.s32 %s22, %s29
      %s178 = sor.u32 %s176, %s177
      %p179 = scmp.eq.s32.totalorder %s178, 0
      %s181 = sadd.s32 %s180, 1
      %s182 = scalar_select %p179, %s180, %s181
      %p185 = pneg %p179
      %p186 = scmp.eq.s32.totalorder %s14, 7
      %p187 = por %p185, %p186
      %p188 = scmp.ne.s32.totalorder %s180, %s183
      %p189 = scmp.eq.s32.totalorder %s14, 0
      %p190 = por %p188, %p189
      %p191 = scmp.ne.s32.totalorder %s180, %s183
      %p192 = scmp.eq.s32.totalorder %s19, 7
      %p193 = por %p191, %p192
      %p194 = scmp.ne.s32.totalorder %s183, %s184
      %p195 = scmp.eq.s32.totalorder %s19, 0
      %p196 = por %p194, %p195
      %p197 = scmp.ne.s32.totalorder %s183, %s184
      %p198 = scmp.eq.s32.totalorder %s20, 7
      %p199 = por %p197, %p198
      %p201 = scmp.ne.s32.totalorder %s184, %s200
      %p202 = scmp.eq.s32.totalorder %s20, 0
      %p203 = por %p201, %p202
      %p204 = scmp.le.s32.totalorder 1, %s14
      %p205 = scmp.lt.s32.totalorder %s14, 9
      %p206 = pnand %p204, %p205
      %p207 = pneg %p206
      // Predicated region
      $region9: #{tpu_custom_call.1} parent=5 // pred_check
        _
      $region10: #{tpu_custom_call.1} parent=5 // pred_check_branch
        %209 = sbr.rel (%p206) target = $region12
      $region11: #{tpu_custom_call.1} parent=5 // pred_region
        %s210 = ssub.s32 %s14, 1
        // Predicated region
        $region13: #{tpu_custom_call.1} parent=11 // pred_check
          %p211 = pneg %p147
        $region14: #{tpu_custom_call.1} parent=11 // pred_check_branch
          %213 = sbr.rel (%p211) target = $region16
        $region15: #{tpu_custom_call.1} parent=11 // pred_region
          _
        $region16: #{tpu_custom_call.1} parent=11 // pred_fallthru
          _
        // Predicated region
        $region17: #{tpu_custom_call.1} parent=11 // pred_check
          %p214 = pneg %p168
        $region18: #{tpu_custom_call.1} parent=11 // pred_check_branch
          %216 = sbr.rel (%p214) target = $region20
        $region19: #{tpu_custom_call.1} parent=11 // pred_region
          _
        $region20: #{tpu_custom_call.1} parent=11 // pred_fallthru
          _
      $region12: #{tpu_custom_call.1} parent=5 // pred_fallthru
        _
      %p217 = scmp.lt.s32.totalorder %s14, 8
      // Predicated region
      $region21: #{tpu_custom_call.1} parent=5 // pred_check
        %p218 = pneg %p217
      $region22: #{tpu_custom_call.1} parent=5 // pred_check_branch
        %220 = sbr.rel (%p218) target = $region24
      $region23: #{tpu_custom_call.1} parent=5 // pred_region
        // Predicated region
        $region25: #{tpu_custom_call.1} parent=23 // pred_check
          %p221 = pneg %p48
        $region26: #{tpu_custom_call.1} parent=23 // pred_check_branch
          %223 = sbr.rel (%p221) target = $region28
        $region27: #{tpu_custom_call.1} parent=23 // pred_region
          %s224 = smul.u32 4, %s22
          %p225 = scmp.lt.s32.totalorder %s21, 1
          %s226 = scalar_select %p225, %s21, 1
          %p227 = scmp.lt.s32.totalorder %s224, 15
          %s228 = scalar_select %p227, %s224, 15
          %s229 = smul.addr %s228, 3
          %s230 = smul.addr %s226, 48
          %s231 = sadd.s32 %s229, %s230
          %s232 = smul.addr %s231, 4
          %s233 = scalar_lea.vmem %s0, %s232
          %s234 = smul.u32 4, %s22
        $region28: #{tpu_custom_call.1} parent=23 // pred_fallthru
          _
        // Predicated region
        $region29: #{tpu_custom_call.1} parent=23 // pred_check
          %p235 = pneg %p84
        $region30: #{tpu_custom_call.1} parent=23 // pred_check_branch
          %237 = sbr.rel (%p235) target = $region32
        $region31: #{tpu_custom_call.1} parent=23 // pred_region
          %s238 = smul.u32 %s22, 4
          %s239 = ssub.s32 %s238, 1
          %p240 = scmp.gt.s32.totalorder %s239, 0
          %s241 = scalar_select %p240, %s239, 0
          %p242 = scmp.lt.s32.totalorder %s21, 1
          %s243 = scalar_select %p242, %s21, 1
          %p244 = scmp.lt.s32.totalorder %s241, 15
          %s245 = scalar_select %p244, %s241, 15
          %s246 = smul.addr %s245, 3
          %s247 = smul.addr %s243, 48
          %s248 = sadd.s32 %s246, %s247
          %s249 = smul.addr %s248, 4
          %s250 = scalar_lea.vmem %s1, %s249
          %s251 = smul.u32 %s22, 4
          %s252 = ssub.s32 %s251, 1
          %p253 = scmp.gt.s32.totalorder %s252, 0
          %s254 = scalar_select %p253, %s252, 0
        $region32: #{tpu_custom_call.1} parent=23 // pred_fallthru
          _
        // Predicated region
        $region33: #{tpu_custom_call.1} parent=23 // pred_check
          %p255 = pneg %p120
        $region34: #{tpu_custom_call.1} parent=23 // pred_check_branch
          %257 = sbr.rel (%p255) target = $region36
        $region35: #{tpu_custom_call.1} parent=23 // pred_region
          %s258 = sadd.s32 %s22, 1
          %s259 = smul.u32 %s258, 4
          %p260 = scmp.lt.s32.totalorder %s259, 15
          %s261 = scalar_select %p260, %s259, 15
          %p262 = scmp.lt.s32.totalorder %s21, 1
          %s263 = scalar_select %p262, %s21, 1
          %p264 = scmp.lt.s32.totalorder %s261, 15
          %s265 = scalar_select %p264, %s261, 15
          %s266 = smul.addr %s265, 3
          %s267 = smul.addr %s263, 48
          %s268 = sadd.s32 %s266, %s267
          %s269 = smul.addr %s268, 4
          %s270 = scalar_lea.vmem %s2, %s269
          %s271 = sadd.s32 %s22, 1
          %s272 = smul.u32 %s271, 4
          %p273 = scmp.lt.s32.totalorder %s272, 15
          %s274 = scalar_select %p273, %s272, 15
        $region36: #{tpu_custom_call.1} parent=23 // pred_fallthru
          _
      $region24: #{tpu_custom_call.1} parent=5 // pred_fallthru
        _
      %p275 = scmp.le.s32.totalorder 1, %s14
      %p276 = scmp.lt.s32.totalorder %s14, 9
      %p277 = pnand %p275, %p276
      %p278 = pneg %p277
      // Predicated region
      $region37: #{tpu_custom_call.1} parent=5 // pred_check
        _
      $region38: #{tpu_custom_call.1} parent=5 // pred_check_branch
        %280 = sbr.rel (%p277) target = $region40
      $region39: #{tpu_custom_call.1} parent=5 // pred_region
        %s281 = ssub.s32 %s14, 1
        %s282 = smul.u32 4, %s24
        %p283 = scmp.lt.s32.totalorder %s23, 1
        %s284 = scalar_select %p283, %s23, 1
        %p285 = scmp.lt.s32.totalorder %s282, 15
        %s286 = scalar_select %p285, %s282, 15
        %s287 = smul.addr %s286, 3
        %s288 = smul.addr %s284, 48
        %s289 = sadd.s32 %s287, %s288
        %s290 = smul.addr %s289, 4
        %s291 = scalar_lea.vmem %s0, %s290
        %p292 = pneg %p54
        %p293 = pneg %p51
        %s294 = smul.u32 %s24, 4
        %s295 = ssub.s32 %s294, 1
        %p296 = scmp.gt.s32.totalorder %s295, 0
        %s297 = scalar_select %p296, %s295, 0
        %p298 = scmp.lt.s32.totalorder %s23, 1
        %s299 = scalar_select %p298, %s23, 1
        %p300 = scmp.lt.s32.totalorder %s297, 15
        %s301 = scalar_select %p300, %s297, 15
        %s302 = smul.addr %s301, 3
        %s303 = smul.addr %s299, 48
        %s304 = sadd.s32 %s302, %s303
        %s305 = smul.addr %s304, 4
        %s306 = scalar_lea.vmem %s1, %s305
        %p307 = pneg %p90
        %p308 = pneg %p87
        %s309 = sadd.s32 %s24, 1
        %s310 = smul.u32 %s309, 4
        %p311 = scmp.lt.s32.totalorder %s310, 15
        %s312 = scalar_select %p311, %s310, 15
        %p313 = scmp.lt.s32.totalorder %s23, 1
        %s314 = scalar_select %p313, %s23, 1
        %p315 = scmp.lt.s32.totalorder %s312, 15
        %s316 = scalar_select %p315, %s312, 15
        %s317 = smul.addr %s316, 3
        %s318 = smul.addr %s314, 48
        %s319 = sadd.s32 %s317, %s318
        %s320 = smul.addr %s319, 4
        %s321 = scalar_lea.vmem %s2, %s320
        %p322 = pneg %p126
        %p323 = pneg %p123
        %p324 = pneg %p147
        %p325 = pneg %p144
        %p326 = pneg %p168
        %p327 = pneg %p165
        %p328 = pneg %p196
        %p329 = pneg %p193
        %s330 = sand.u32 %s183, 1
        %s331 = scalar_lea.sflag [#allocation4], %s330
        %s332 = sand.u32 %s183, 1
        %s333 = smul.addr %s332, 32
        %s334 = scalar_lea.vmem [#allocation3], %s333
        %s335 = smul.u32 4, %s24
        %p336 = scmp.lt.s32.totalorder %s23, 1
        %s337 = scalar_select %p336, %s23, 1
        %p338 = scmp.lt.s32.totalorder %s335, 15
        %s339 = scalar_select %p338, %s335, 15
        %s340 = smul.addr %s339, 3
        %s341 = smul.addr %s337, 48
        %s342 = sadd.s32 %s340, %s341
        %s343 = smul.addr %s342, 4
        %s344 = scalar_lea.vmem %s0, %s343
        %s345 = smul.u32 4, %s24
        %s346 = smul.u32 %s24, 4
        %s347 = ssub.s32 %s346, 1
        %p348 = scmp.gt.s32.totalorder %s347, 0
        %s349 = scalar_select %p348, %s347, 0
        %p350 = scmp.lt.s32.totalorder %s23, 1
        %s351 = scalar_select %p350, %s23, 1
        %p352 = scmp.lt.s32.totalorder %s349, 15
        %s353 = scalar_select %p352, %s349, 15
        %s354 = smul.addr %s353, 3
        %s355 = smul.addr %s351, 48
        %s356 = sadd.s32 %s354, %s355
        %s357 = smul.addr %s356, 4
        %s358 = scalar_lea.vmem %s1, %s357
        %s359 = smul.u32 %s24, 4
        %s360 = ssub.s32 %s359, 1
        %p361 = scmp.gt.s32.totalorder %s360, 0
        %s362 = scalar_select %p361, %s360, 0
        %s363 = sadd.s32 %s24, 1
        %s364 = smul.u32 %s363, 4
        %p365 = scmp.lt.s32.totalorder %s364, 15
        %s366 = scalar_select %p365, %s364, 15
        %p367 = scmp.lt.s32.totalorder %s23, 1
        %s368 = scalar_select %p367, %s23, 1
        %p369 = scmp.lt.s32.totalorder %s366, 15
        %s370 = scalar_select %p369, %s366, 15
        %s371 = smul.addr %s370, 3
        %s372 = smul.addr %s368, 48
        %s373 = sadd.s32 %s371, %s372
        %s374 = smul.addr %s373, 4
        %s375 = scalar_lea.vmem %s2, %s374
        %s376 = sadd.s32 %s24, 1
        %s377 = smul.u32 %s376, 4
        %p378 = scmp.lt.s32.totalorder %s377, 15
        %s379 = scalar_select %p378, %s377, 15
        %s380 = smul.u32 8, %s24
        %v382 = vld [vmem:[%s344] sm:$0xf]
        %v383 = vld [vmem:[%s344 + $0x4] sm:$0xf]
        %v384 = vld [vmem:[%s344 + $0x8] sm:$0x1]
        %v385 = vld [vmem:[%s344 + $0xc] sm:$0xf]
        %v386 = vld [vmem:[%s344 + $0x10] sm:$0xf]
        %v387 = vld [vmem:[%s344 + $0x14] sm:$0x1]
        %v388 = vld [vmem:[%s344 + $0x18] sm:$0xf]
        %v389 = vld [vmem:[%s344 + $0x1c] sm:$0xf]
        %v390 = vld [vmem:[%s344 + $0x20] sm:$0x1]
        %v391 = vld [vmem:[%s344 + $0x24] sm:$0xf]
        %v392 = vld [vmem:[%s344 + $0x28] sm:$0xf]
        %v393 = vld [vmem:[%s344 + $0x2c] sm:$0x1]
        %s394 = scalar_lea.vmem [#allocation2], 12
        %vm395 = vcmask 125952
        %396 = vst.msk [vmem:[%s394] sm:$0xf] %vm395, %v382
        %397 = vst.msk [vmem:[%s394 + $0x4] sm:$0xf] %vm395, %v383
        %vm398 = vcmask 122880
        %399 = vst.msk [vmem:[%s394 + $0x8] sm:$0x1] %vm398, %v384
        %400 = vst.msk [vmem:[%s394 + $0xc] sm:$0xf] %vm395, %v385
        %401 = vst.msk [vmem:[%s394 + $0x10] sm:$0xf] %vm395, %v386
        %402 = vst.msk [vmem:[%s394 + $0x14] sm:$0x1] %vm398, %v387
        %403 = vst.msk [vmem:[%s394 + $0x18] sm:$0xf] %vm395, %v388
        %404 = vst.msk [vmem:[%s394 + $0x1c] sm:$0xf] %vm395, %v389
        %405 = vst.msk [vmem:[%s394 + $0x20] sm:$0x1] %vm398, %v390
        %406 = vst.msk [vmem:[%s394 + $0x24] sm:$0xf] %vm395, %v391
        %407 = vst.msk [vmem:[%s394 + $0x28] sm:$0xf] %vm395, %v392
        %408 = vst.msk [vmem:[%s394 + $0x2c] sm:$0x1] %vm398, %v393
        %p409 = scmp.gt.s32.totalorder %s24, 0
        // Predicated region
        $region41: #{tpu_custom_call.1} parent=39 // pred_check
          %p410 = pneg %p409
        $region42: #{tpu_custom_call.1} parent=39 // pred_check_branch
          %412 = sbr.rel (%p410) target = $region44
        $region43: #{tpu_custom_call.1} parent=39 // pred_region
          %v413 = vld [vmem:[%s358] sm:$0xf]
          %v414 = vld [vmem:[%s358 + $0x4] sm:$0xf]
          %v415 = vld [vmem:[%s358 + $0x8] sm:$0x1]
          %416 = vst.msk [vmem:[#allocation2] sm:$0xf] %vm395, %v413
          %417 = vst.msk [vmem:[#allocation2 + $0x4] sm:$0xf] %vm395, %v414
          %418 = vst.msk [vmem:[#allocation2 + $0x8] sm:$0x1] %vm398, %v415
        $region44: #{tpu_custom_call.1} parent=39 // pred_fallthru
          _
        %p419 = scmp.eq.s32.totalorder %s24, 0
        // Predicated region
        $region45: #{tpu_custom_call.1} parent=39 // pred_check
          %p420 = pneg %p419
        $region46: #{tpu_custom_call.1} parent=39 // pred_check_branch
          %422 = sbr.rel (%p420) target = $region48
        $region47: #{tpu_custom_call.1} parent=39 // pred_region
          %423 = vst.msk [vmem:[#allocation2] sm:$0xf] %vm395, 0
          %424 = vst.msk [vmem:[#allocation2 + $0x4] sm:$0xf] %vm395, 0
          %425 = vst.msk [vmem:[#allocation2 + $0x8] sm:$0x1] %vm398, 0
        $region48: #{tpu_custom_call.1} parent=39 // pred_fallthru
          _
        %p426 = scmp.lt.s32.totalorder %s24, 3
        // Predicated region
        $region49: #{tpu_custom_call.1} parent=39 // pred_check
          %p427 = pneg %p426
        $region50: #{tpu_custom_call.1} parent=39 // pred_check_branch
          %429 = sbr.rel (%p427) target = $region52
        $region51: #{tpu_custom_call.1} parent=39 // pred_region
          %v430 = vld [vmem:[%s375] sm:$0xf]
          %v431 = vld [vmem:[%s375 + $0x4] sm:$0xf]
          %v432 = vld [vmem:[%s375 + $0x8] sm:$0x1]
          %s433 = scalar_lea.vmem [#allocation2], 60
          %434 = vst.msk [vmem:[%s433] sm:$0xf] %vm395, %v430
          %435 = vst.msk [vmem:[%s433 + $0x4] sm:$0xf] %vm395, %v431
          %436 = vst.msk [vmem:[%s433 + $0x8] sm:$0x1] %vm398, %v432
        $region52: #{tpu_custom_call.1} parent=39 // pred_fallthru
          _
        %p437 = scmp.eq.s32.totalorder %s24, 3
        // Predicated region
        $region53: #{tpu_custom_call.1} parent=39 // pred_check
          %p438 = pneg %p437
        $region54: #{tpu_custom_call.1} parent=39 // pred_check_branch
          %440 = sbr.rel (%p438) target = $region56
        $region55: #{tpu_custom_call.1} parent=39 // pred_region
          %s441 = scalar_lea.vmem [#allocation2], 60
          %442 = vst.msk [vmem:[%s441] sm:$0xf] %vm395, 0
          %443 = vst.msk [vmem:[%s441 + $0x4] sm:$0xf] %vm395, 0
          %444 = vst.msk [vmem:[%s441 + $0x8] sm:$0x1] %vm398, 0
        $region56: #{tpu_custom_call.1} parent=39 // pred_fallthru
          _
        %v445 = vld [vmem:[#allocation2] sm:$0xf]
        %v446 = vld [vmem:[#allocation2 + $0x4] sm:$0xf]
        %v447 = vld [vmem:[#allocation2 + $0xc] sm:$0xf]
        %v448 = vld [vmem:[#allocation2 + $0x10] sm:$0xf]
        %v449 = vld [vmem:[#allocation2 + $0x18] sm:$0xf]
        %v450 = vld [vmem:[#allocation2 + $0x1c] sm:$0xf]
        %v451 = vld [vmem:[#allocation2 + $0x24] sm:$0xf]
        %v452 = vld [vmem:[#allocation2 + $0x28] sm:$0xf]
        %v453 = vld [vmem:[%s3] sm:$0xf]
        %v454 = vld [vmem:[%s3 + $0x4] sm:$0xf]
        %v455 = vld [vmem:[#allocation2 + $0x8] sm:$0x1]
        %v456 = vld [vmem:[#allocation2 + $0x14] sm:$0x1]
        %v457 = vld [vmem:[#allocation2 + $0x20] sm:$0x1]
        %v458 = vld [vmem:[#allocation2 + $0x2c] sm:$0x1]
        %vm459 = vsmask.f32 3328
        %vm460 = vsmask.f32 7440
        %vm461 = vmor %vm459, %vm460
        %v463 = vshrl.u32 %v445, 16
        %v465 = vrot.slane %v463, 4
        %v466 = vshll.u32 %v445, 16
        %v468 = vrot.slane %v466, 5
        %v469 = vor.u32 %v465, %v468
        %v470 = vrot.slane %v469, 4
        %v472 = vshll.u32 %v446, 16
        %v474 = vrot.slane %v472, 5
        %v475 = vsel %vm461, %v470, %v474
        %v476 = vshrl.u32 %v446, 16
        %v478 = vrot.slane %v476, 4
        %v479 = vor.u32 %v478, %v474
        %v480 = vrot.slane %v479, 4
        %v482 = vshll.u32 %v455, 16
        %v484 = vrot.slane %v482, 5
        %v485 = vsel %vm461, %v480, %v484
        %v487 = vshrl.u32 %v447, 16
        %v489 = vrot.slane %v487, 4
        %v490 = vshll.u32 %v447, 16
        %v492 = vrot.slane %v490, 5
        %v493 = vor.u32 %v489, %v492
        %v494 = vrot.slane %v493, 4
        %v496 = vshll.u32 %v448, 16
        %v498 = vrot.slane %v496, 5
        %v499 = vsel %vm461, %v494, %v498
        %v500 = vshrl.u32 %v448, 16
        %v502 = vrot.slane %v500, 4
        %v503 = vor.u32 %v502, %v498
        %v504 = vrot.slane %v503, 4
        %v506 = vshll.u32 %v456, 16
        %v508 = vrot.slane %v506, 5
        %v509 = vsel %vm461, %v504, %v508
        %v511 = vshrl.u32 %v449, 16
        %v513 = vrot.slane %v511, 4
        %v514 = vshll.u32 %v449, 16
        %v516 = vrot.slane %v514, 5
        %v517 = vor.u32 %v513, %v516
        %v518 = vrot.slane %v517, 4
        %v520 = vshll.u32 %v450, 16
        %v522 = vrot.slane %v520, 5
        %v523 = vsel %vm461, %v518, %v522
        %v524 = vshrl.u32 %v450, 16
        %v526 = vrot.slane %v524, 4
        %v527 = vor.u32 %v526, %v522
        %v528 = vrot.slane %v527, 4
        %v530 = vshll.u32 %v457, 16
        %v532 = vrot.slane %v530, 5
        %v533 = vsel %vm461, %v528, %v532
        %v535 = vshrl.u32 %v451, 16
        %v537 = vrot.slane %v535, 4
        %v538 = vshll.u32 %v451, 16
        %v540 = vrot.slane %v538, 5
        %v541 = vor.u32 %v537, %v540
        %v542 = vrot.slane %v541, 4
        %v544 = vshll.u32 %v452, 16
        %v546 = vrot.slane %v544, 5
        %v547 = vsel %vm461, %v542, %v546
        %v548 = vshrl.u32 %v452, 16
        %v550 = vrot.slane %v548, 4
        %v551 = vor.u32 %v550, %v546
        %v552 = vrot.slane %v551, 4
        %v554 = vshll.u32 %v458, 16
        %v556 = vrot.slane %v554, 5
        %v557 = vsel %vm461, %v552, %v556
        %s558 = scalar_lea.vmem %s3, 8
        %v559 = vld [vmem:[%s558] sm:$0xf]
        %v560 = vld [vmem:[%s558 + $0x4] sm:$0xf]
        %v561 = vunpack.c.l.b16 %v475
        %v562 = vunpack.c.l.b16 %v485
        %v563 = vunpack.c.l.b16 %v499
        %v564 = vunpack.c.l.b16 %v509
        %v565 = vunpack.c.l.b16 %v523
        %v566 = vunpack.c.l.b16 %v533
        %v567 = vunpack.c.l.b16 %v547
        %v568 = vunpack.c.l.b16 %v557
        %v569 = vpack.c.b16 %v562, %v561
        %v570 = vpack.c.b16 %v564, %v563
        %v571 = vpack.c.b16 %v566, %v565
        %v572 = vpack.c.b16 %v568, %v567
        %v575 = vunpack.c.l.b16 %v559
        %v576 = vunpack.c.l.b16 %v560
        %v577 = vpack.c.b16 %v576, %v575
        %vm579 = vcmask 130048
        %v581 = vsel %vm579, %v569, 0
        %v584 = vsel %vm579, %v570, 0
        %v587 = vsel %vm579, %v571, 0
        %v590 = vsel %vm579, %v572, 0
        %592 = vmatprep.subr.bf16.mxu0 0
        %593 = vmatpush1.bf16.msra.mxu0 %v577
        %594 = vmatprep.subr.bf16.mxu0 0
        %595 = vmatpush1.bf16.msra.mxu0 0
        %596 = vmatprep.subr.bf16.mxu0 0
        %597 = vmatpush1.bf16.msra.mxu0 0
        %598 = vmatprep.subr.bf16.mxu0 0
        %599 = vmatpush1.bf16.msra.mxu0 0
        %600 = vmatprep.subr.bf16.mxu0 0
        %601 = vmatpush1.bf16.msra.mxu0 0
        %602 = vmatprep.subr.bf16.mxu0 0
        %603 = vmatpush1.bf16.msra.mxu0 0
        %604 = vmatprep.subr.bf16.mxu0 0
        %605 = vmatpush1.bf16.msra.mxu0 0
        %606 = vmatprep.subr.bf16.mxu0 0
        %607 = vmatpush1.bf16.msra.mxu0 0
        %608 = vmatprep.subr.bf16.mxu0 0
        %609 = vmatpush1.bf16.msra.mxu0 0
        %610 = vmatprep.subr.bf16.mxu0 0
        %611 = vmatpush1.bf16.msra.mxu0 0
        %612 = vmatprep.subr.bf16.mxu0 0
        %613 = vmatpush1.bf16.msra.mxu0 0
        %614 = vmatprep.subr.bf16.mxu0 0
        %615 = vmatpush1.bf16.msra.mxu0 0
        %616 = vmatprep.subr.bf16.mxu0 0
        %617 = vmatpush1.bf16.msra.mxu0 0
        %618 = vmatprep.subr.bf16.mxu0 0
        %619 = vmatpush1.bf16.msra.mxu0 0
        %620 = vmatprep.subr.bf16.mxu0 0
        %621 = vmatpush1.bf16.msra.mxu0 0
        %622 = vmatprep.subr.bf16.mxu0 0
        %623 = vmatpush1.bf16.msra.mxu0 0
        %624 = vmatprep.mubr.bf16.mxu0 0
        %625 = vmatmul.mubr.bf16.gmra.mrb[0].mxu0 %v581
        %v626 = vpop.f32.mrb[0].mxu0
        %v627 = vadd.f32 0.0, %v626
        %v628 = vpop.f32.mrb[0].mxu0
        %v629 = vpop.f32.mrb[0].mxu0
        %v630 = vadd.f32 0.0, %v629
        %v631 = vpop.f32.mrb[0].mxu0
        %632 = vmatprep.mubr.bf16.mxu0 0
        %633 = vmatmul.mubr.bf16.gmra.mrb[0].mxu0 %v584
        %v634 = vpop.f32.mrb[0].mxu0
        %v635 = vadd.f32 0.0, %v634
        %v636 = vpop.f32.mrb[0].mxu0
        %v637 = vpop.f32.mrb[0].mxu0
        %v638 = vadd.f32 0.0, %v637
        %v639 = vpop.f32.mrb[0].mxu0
        %640 = vmatprep.mubr.bf16.mxu0 0
        %641 = vmatmul.mubr.bf16.gmra.mrb[0].mxu0 %v587
        %v642 = vpop.f32.mrb[0].mxu0
        %v643 = vadd.f32 0.0, %v642
        %v644 = vpop.f32.mrb[0].mxu0
        %v645 = vpop.f32.mrb[0].mxu0
        %v646 = vadd.f32 0.0, %v645
        %v647 = vpop.f32.mrb[0].mxu0
        %648 = vmatprep.mubr.bf16.mxu0 0
        %649 = vmatmul.mubr.bf16.gmra.mrb[0].mxu0 %v590
        %v650 = vpop.f32.mrb[0].mxu0
        %v651 = vadd.f32 0.0, %v650
        %v652 = vpop.f32.mrb[0].mxu0
        %v653 = vpop.f32.mrb[0].mxu0
        %v654 = vadd.f32 0.0, %v653
        %v655 = vpop.f32.mrb[0].mxu0
        %656 = vdwg.mxu0
        %v665 = vunpack.c.l.b16 %v445
        %v666 = vunpack.c.l.b16 %v446
        %v667 = vunpack.c.l.b16 %v447
        %v668 = vunpack.c.l.b16 %v448
        %v669 = vunpack.c.l.b16 %v449
        %v670 = vunpack.c.l.b16 %v450
        %v671 = vunpack.c.l.b16 %v451
        %v672 = vunpack.c.l.b16 %v452
        %v673 = vpack.c.b16 %v666, %v665
        %v674 = vpack.c.b16 %v668, %v667
        %v675 = vpack.c.b16 %v670, %v669
        %v676 = vpack.c.b16 %v672, %v671
        %v679 = vunpack.c.l.b16 %v453
        %v680 = vunpack.c.l.b16 %v454
        %v681 = vpack.c.b16 %v680, %v679
        %v684 = vsel %vm579, %v673, 0
        %v687 = vsel %vm579, %v674, 0
        %v690 = vsel %vm579, %v675, 0
        %v693 = vsel %vm579, %v676, 0
        %695 = vmatprep.subr.bf16.mxu0 0
        %696 = vmatpush1.bf16.msra.mxu0 %v681
        %697 = vmatprep.subr.bf16.mxu0 0
        %698 = vmatpush1.bf16.msra.mxu0 0
        %699 = vmatprep.subr.bf16.mxu0 0
        %700 = vmatpush1.bf16.msra.mxu0 0
        %701 = vmatprep.subr.bf16.mxu0 0
        %702 = vmatpush1.bf16.msra.mxu0 0
        %703 = vmatprep.subr.bf16.mxu0 0
        %704 = vmatpush1.bf16.msra.mxu0 0
        %705 = vmatprep.subr.bf16.mxu0 0
        %706 = vmatpush1.bf16.msra.mxu0 0
        %707 = vmatprep.subr.bf16.mxu0 0
        %708 = vmatpush1.bf16.msra.mxu0 0
        %709 = vmatprep.subr.bf16.mxu0 0
        %710 = vmatpush1.bf16.msra.mxu0 0
        %711 = vmatprep.subr.bf16.mxu0 0
        %712 = vmatpush1.bf16.msra.mxu0 0
        %713 = vmatprep.subr.bf16.mxu0 0
        %714 = vmatpush1.bf16.msra.mxu0 0
        %715 = vmatprep.subr.bf16.mxu0 0
        %716 = vmatpush1.bf16.msra.mxu0 0
        %717 = vmatprep.subr.bf16.mxu0 0
        %718 = vmatpush1.bf16.msra.mxu0 0
        %719 = vmatprep.subr.bf16.mxu0 0
        %720 = vmatpush1.bf16.msra.mxu0 0
        %721 = vmatprep.subr.bf16.mxu0 0
        %722 = vmatpush1.bf16.msra.mxu0 0
        %723 = vmatprep.subr.bf16.mxu0 0
        %724 = vmatpush1.bf16.msra.mxu0 0
        %725 = vmatprep.subr.bf16.mxu0 0
        %726 = vmatpush1.bf16.msra.mxu0 0
        %727 = vmatprep.mubr.bf16.mxu0 0
        %728 = vmatmul.mubr.bf16.gmra.mrb[0].mxu0 %v684
        %v729 = vpop.f32.mrb[0].mxu0
        %v730 = vadd.f32 %v627, %v729
        %v731 = vpop.f32.mrb[0].mxu0
        %v732 = vpop.f32.mrb[0].mxu0
        %v733 = vadd.f32 %v630, %v732
        %v734 = vpop.f32.mrb[0].mxu0
        %735 = vmatprep.mubr.bf16.mxu0 0
        %736 = vmatmul.mubr.bf16.gmra.mrb[0].mxu0 %v687
        %v737 = vpop.f32.mrb[0].mxu0
        %v738 = vadd.f32 %v635, %v737
        %v739 = vpop.f32.mrb[0].mxu0
        %v740 = vpop.f32.mrb[0].mxu0
        %v741 = vadd.f32 %v638, %v740
        %v742 = vpop.f32.mrb[0].mxu0
        %743 = vmatprep.mubr.bf16.mxu0 0
        %744 = vmatmul.mubr.bf16.gmra.mrb[0].mxu0 %v690
        %v745 = vpop.f32.mrb[0].mxu0
        %v746 = vadd.f32 %v643, %v745
        %v747 = vpop.f32.mrb[0].mxu0
        %v748 = vpop.f32.mrb[0].mxu0
        %v749 = vadd.f32 %v646, %v748
        %v750 = vpop.f32.mrb[0].mxu0
        %751 = vmatprep.mubr.bf16.mxu0 0
        %752 = vmatmul.mubr.bf16.gmra.mrb[0].mxu0 %v693
        %v753 = vpop.f32.mrb[0].mxu0
        %v754 = vadd.f32 %v651, %v753
        %v755 = vpop.f32.mrb[0].mxu0
        %v756 = vpop.f32.mrb[0].mxu0
        %v757 = vadd.f32 %v654, %v756
        %v758 = vpop.f32.mrb[0].mxu0
        %759 = vdwg.mxu0
        %v760 = vld [vmem:[#allocation2] sm:$0xe]
        %v761 = vld [vmem:[#allocation2 + $0xc] sm:$0xe]
        %v762 = vld [vmem:[#allocation2 + $0x18] sm:$0xe]
        %v763 = vld [vmem:[#allocation2 + $0x24] sm:$0xe]
        %vm772 = vcmask 1042432
        %vm773 = vcmask 1046532
        %vm774 = vmor %vm772, %vm773
        %v775 = vrot.slane %v760, 5
        %v776 = vrot.slane %v775, 4
        %v777 = vrot.slane %v446, 5
        %v778 = vsel %vm774, %v776, %v777
        %v779 = vrot.slane %v777, 4
        %v780 = vrot.slane %v455, 5
        %v781 = vsel %vm774, %v779, %v780
        %v782 = vrot.slane %v761, 5
        %v783 = vrot.slane %v782, 4
        %v784 = vrot.slane %v448, 5
        %v785 = vsel %vm774, %v783, %v784
        %v786 = vrot.slane %v784, 4
        %v787 = vrot.slane %v456, 5
        %v788 = vsel %vm774, %v786, %v787
        %v789 = vrot.slane %v762, 5
        %v790 = vrot.slane %v789, 4
        %v791 = vrot.slane %v450, 5
        %v792 = vsel %vm774, %v790, %v791
        %v793 = vrot.slane %v791, 4
        %v794 = vrot.slane %v457, 5
        %v795 = vsel %vm774, %v793, %v794
        %v796 = vrot.slane %v763, 5
        %v797 = vrot.slane %v796, 4
        %v798 = vrot.slane %v452, 5
        %v799 = vsel %vm774, %v797, %v798
        %v800 = vrot.slane %v798, 4
        %v801 = vrot.slane %v458, 5
        %v802 = vsel %vm774, %v800, %v801
        %s803 = scalar_lea.vmem %s3, 16
        %v804 = vld [vmem:[%s803] sm:$0xf]
        %v805 = vld [vmem:[%s803 + $0x4] sm:$0xf]
        %v806 = vunpack.c.l.b16 %v778
        %v807 = vunpack.c.l.b16 %v781
        %v808 = vunpack.c.l.b16 %v785
        %v809 = vunpack.c.l.b16 %v788
        %v810 = vunpack.c.l.b16 %v792
        %v811 = vunpack.c.l.b16 %v795
        %v812 = vunpack.c.l.b16 %v799
        %v813 = vunpack.c.l.b16 %v802
        %v814 = vpack.c.b16 %v807, %v806
        %v815 = vpack.c.b16 %v809, %v808
        %v816 = vpack.c.b16 %v811, %v810
        %v817 = vpack.c.b16 %v813, %v812
        %v820 = vunpack.c.l.b16 %v804
        %v821 = vunpack.c.l.b16 %v805
        %v822 = vpack.c.b16 %v821, %v820
        %v825 = vsel %vm579, %v814, 0
        %v828 = vsel %vm579, %v815, 0
        %v831 = vsel %vm579, %v816, 0
        %v834 = vsel %vm579, %v817, 0
        %836 = vmatprep.subr.bf16.mxu0 0
        %837 = vmatpush1.bf16.msra.mxu0 %v822
        %838 = vmatprep.subr.bf16.mxu0 0
        %839 = vmatpush1.bf16.msra.mxu0 0
        %840 = vmatprep.subr.bf16.mxu0 0
        %841 = vmatpush1.bf16.msra.mxu0 0
        %842 = vmatprep.subr.bf16.mxu0 0
        %843 = vmatpush1.bf16.msra.mxu0 0
        %844 = vmatprep.subr.bf16.mxu0 0
        %845 = vmatpush1.bf16.msra.mxu0 0
        %846 = vmatprep.subr.bf16.mxu0 0
        %847 = vmatpush1.bf16.msra.mxu0 0
        %848 = vmatprep.subr.bf16.mxu0 0
        %849 = vmatpush1.bf16.msra.mxu0 0
        %850 = vmatprep.subr.bf16.mxu0 0
        %851 = vmatpush1.bf16.msra.mxu0 0
        %852 = vmatprep.subr.bf16.mxu0 0
        %853 = vmatpush1.bf16.msra.mxu0 0
        %854 = vmatprep.subr.bf16.mxu0 0
        %855 = vmatpush1.bf16.msra.mxu0 0
        %856 = vmatprep.subr.bf16.mxu0 0
        %857 = vmatpush1.bf16.msra.mxu0 0
        %858 = vmatprep.subr.bf16.mxu0 0
        %859 = vmatpush1.bf16.msra.mxu0 0
        %860 = vmatprep.subr.bf16.mxu0 0
        %861 = vmatpush1.bf16.msra.mxu0 0
        %862 = vmatprep.subr.bf16.mxu0 0
        %863 = vmatpush1.bf16.msra.mxu0 0
        %864 = vmatprep.subr.bf16.mxu0 0
        %865 = vmatpush1.bf16.msra.mxu0 0
        %866 = vmatprep.subr.bf16.mxu0 0
        %867 = vmatpush1.bf16.msra.mxu0 0
        %868 = vmatprep.mubr.bf16.mxu0 0
        %869 = vmatmul.mubr.bf16.gmra.mrb[0].mxu0 %v825
        %v870 = vpop.f32.mrb[0].mxu0
        %v871 = vadd.f32 0.0, %v870
        %v872 = vpop.f32.mrb[0].mxu0
        %v873 = vpop.f32.mrb[0].mxu0
        %v874 = vadd.f32 0.0, %v873
        %v875 = vpop.f32.mrb[0].mxu0
        %876 = vmatprep.mubr.bf16.mxu0 0
        %877 = vmatmul.mubr.bf16.gmra.mrb[0].mxu0 %v828
        %v878 = vpop.f32.mrb[0].mxu0
        %v879 = vadd.f32 0.0, %v878
        %v880 = vpop.f32.mrb[0].mxu0
        %v881 = vpop.f32.mrb[0].mxu0
        %v882 = vadd.f32 0.0, %v881
        %v883 = vpop.f32.mrb[0].mxu0
        %884 = vmatprep.mubr.bf16.mxu0 0
        %885 = vmatmul.mubr.bf16.gmra.mrb[0].mxu0 %v831
        %v886 = vpop.f32.mrb[0].mxu0
        %v887 = vadd.f32 0.0, %v886
        %v888 = vpop.f32.mrb[0].mxu0
        %v889 = vpop.f32.mrb[0].mxu0
        %v890 = vadd.f32 0.0, %v889
        %v891 = vpop.f32.mrb[0].mxu0
        %892 = vmatprep.mubr.bf16.mxu0 0
        %893 = vmatmul.mubr.bf16.gmra.mrb[0].mxu0 %v834
        %v894 = vpop.f32.mrb[0].mxu0
        %v895 = vadd.f32 0.0, %v894
        %v896 = vpop.f32.mrb[0].mxu0
        %v897 = vpop.f32.mrb[0].mxu0
        %v898 = vadd.f32 0.0, %v897
        %v899 = vpop.f32.mrb[0].mxu0
        %900 = vdwg.mxu0
        %v901 = vadd.f32 %v730, %v871
        %v902 = vadd.f32 %v733, %v874
        %v903 = vadd.f32 %v738, %v879
        %v904 = vadd.f32 %v741, %v882
        %v905 = vadd.f32 %v746, %v887
        %v906 = vadd.f32 %v749, %v890
        %v907 = vadd.f32 %v754, %v895
        %v908 = vadd.f32 %v757, %v898
        %v909 = vld [vmem:[%s394] sm:$0xf]
        %v910 = vld [vmem:[%s394 + $0x4] sm:$0xf]
        %v911 = vld [vmem:[%s394 + $0xc] sm:$0xf]
        %v912 = vld [vmem:[%s394 + $0x10] sm:$0xf]
        %v913 = vld [vmem:[%s394 + $0x18] sm:$0xf]
        %v914 = vld [vmem:[%s394 + $0x1c] sm:$0xf]
        %v915 = vld [vmem:[%s394 + $0x24] sm:$0xf]
        %v916 = vld [vmem:[%s394 + $0x28] sm:$0xf]
        %s917 = scalar_lea.vmem %s3, 24
        %v918 = vld [vmem:[%s917] sm:$0xf]
        %v919 = vld [vmem:[%s917 + $0x4] sm:$0xf]
        %v928 = vunpack.c.l.b16 %v909
        %v929 = vunpack.c.l.b16 %v910
        %v930 = vunpack.c.l.b16 %v911
        %v931 = vunpack.c.l.b16 %v912
        %v932 = vunpack.c.l.b16 %v913
        %v933 = vunpack.c.l.b16 %v914
        %v934 = vunpack.c.l.b16 %v915
        %v935 = vunpack.c.l.b16 %v916
        %v936 = vpack.c.b16 %v929, %v928
        %v937 = vpack.c.b16 %v931, %v930
        %v938 = vpack.c.b16 %v933, %v932
        %v939 = vpack.c.b16 %v935, %v934
        %v942 = vunpack.c.l.b16 %v918
        %v943 = vunpack.c.l.b16 %v919
        %v944 = vpack.c.b16 %v943, %v942
        %v947 = vsel %vm579, %v936, 0
        %v950 = vsel %vm579, %v937, 0
        %v953 = vsel %vm579, %v938, 0
        %v956 = vsel %vm579, %v939, 0
        %958 = vmatprep.subr.bf16.mxu0 0
        %959 = vmatpush1.bf16.msra.mxu0 %v944
        %960 = vmatprep.subr.bf16.mxu0 0
        %961 = vmatpush1.bf16.msra.mxu0 0
        %962 = vmatprep.subr.bf16.mxu0 0
        %963 = vmatpush1.bf16.msra.mxu0 0
        %964 = vmatprep.subr.bf16.mxu0 0
        %965 = vmatpush1.bf16.msra.mxu0 0
        %966 = vmatprep.subr.bf16.mxu0 0
        %967 = vmatpush1.bf16.msra.mxu0 0
        %968 = vmatprep.subr.bf16.mxu0 0
        %969 = vmatpush1.bf16.msra.mxu0 0
        %970 = vmatprep.subr.bf16.mxu0 0
        %971 = vmatpush1.bf16.msra.mxu0 0
        %972 = vmatprep.subr.bf16.mxu0 0
        %973 = vmatpush1.bf16.msra.mxu0 0
        %974 = vmatprep.subr.bf16.mxu0 0
        %975 = vmatpush1.bf16.msra.mxu0 0
        %976 = vmatprep.subr.bf16.mxu0 0
        %977 = vmatpush1.bf16.msra.mxu0 0
        %978 = vmatprep.subr.bf16.mxu0 0
        %979 = vmatpush1.bf16.msra.mxu0 0
        %980 = vmatprep.subr.bf16.mxu0 0
        %981 = vmatpush1.bf16.msra.mxu0 0
        %982 = vmatprep.subr.bf16.mxu0 0
        %983 = vmatpush1.bf16.msra.mxu0 0
        %984 = vmatprep.subr.bf16.mxu0 0
        %985 = vmatpush1.bf16.msra.mxu0 0
        %986 = vmatprep.subr.bf16.mxu0 0
        %987 = vmatpush1.bf16.msra.mxu0 0
        %988 = vmatprep.subr.bf16.mxu0 0
        %989 = vmatpush1.bf16.msra.mxu0 0
        %990 = vmatprep.mubr.bf16.mxu0 0
        %991 = vmatmul.mubr.bf16.gmra.mrb[0].mxu0 %v947
        %v992 = vpop.f32.mrb[0].mxu0
        %v993 = vadd.f32 0.0, %v992
        %v994 = vpop.f32.mrb[0].mxu0
        %v995 = vpop.f32.mrb[0].mxu0
        %v996 = vadd.f32 0.0, %v995
        %v997 = vpop.f32.mrb[0].mxu0
        %998 = vmatprep.mubr.bf16.mxu0 0
        %999 = vmatmul.mubr.bf16.gmra.mrb[0].mxu0 %v950
        %v1000 = vpop.f32.mrb[0].mxu0
        %v1001 = vadd.f32 0.0, %v1000
        %v1002 = vpop.f32.mrb[0].mxu0
        %v1003 = vpop.f32.mrb[0].mxu0
        %v1004 = vadd.f32 0.0, %v1003
        %v1005 = vpop.f32.mrb[0].mxu0
        %1006 = vmatprep.mubr.bf16.mxu0 0
        %1007 = vmatmul.mubr.bf16.gmra.mrb[0].mxu0 %v953
        %v1008 = vpop.f32.mrb[0].mxu0
        %v1009 = vadd.f32 0.0, %v1008
        %v1010 = vpop.f32.mrb[0].mxu0
        %v1011 = vpop.f32.mrb[0].mxu0
        %v1012 = vadd.f32 0.0, %v1011
        %v1013 = vpop.f32.mrb[0].mxu0
        %1014 = vmatprep.mubr.bf16.mxu0 0
        %1015 = vmatmul.mubr.bf16.gmra.mrb[0].mxu0 %v956
        %v1016 = vpop.f32.mrb[0].mxu0
        %v1017 = vadd.f32 0.0, %v1016
        %v1018 = vpop.f32.mrb[0].mxu0
        %v1019 = vpop.f32.mrb[0].mxu0
        %v1020 = vadd.f32 0.0, %v1019
        %v1021 = vpop.f32.mrb[0].mxu0
        %1022 = vdwg.mxu0
        %v1023 = vadd.f32 %v901, %v993
        %v1024 = vadd.f32 %v902, %v996
        %v1025 = vadd.f32 %v903, %v1001
        %v1026 = vadd.f32 %v904, %v1004
        %v1027 = vadd.f32 %v905, %v1009
        %v1028 = vadd.f32 %v906, %v1012
        %v1029 = vadd.f32 %v907, %v1017
        %v1030 = vadd.f32 %v908, %v1020
        %v1031 = vld [vmem:[%s394] sm:$0xf]
        %v1032 = vld [vmem:[%s394 + $0x4] sm:$0xf]
        %v1033 = vld [vmem:[%s394 + $0x8] sm:$0x1]
        %v1034 = vld [vmem:[%s394 + $0xc] sm:$0xf]
        %v1035 = vld [vmem:[%s394 + $0x10] sm:$0xf]
        %v1036 = vld [vmem:[%s394 + $0x14] sm:$0x1]
        %v1037 = vld [vmem:[%s394 + $0x18] sm:$0xf]
        %v1038 = vld [vmem:[%s394 + $0x1c] sm:$0xf]
        %v1039 = vld [vmem:[%s394 + $0x20] sm:$0x1]
        %v1040 = vld [vmem:[%s394 + $0x24] sm:$0xf]
        %v1041 = vld [vmem:[%s394 + $0x28] sm:$0xf]
        %v1042 = vld [vmem:[%s394 + $0x2c] sm:$0x1]
        %v1044 = vshrl.u32 %v1031, 16
        %v1046 = vrot.slane %v1044, 4
        %v1047 = vshll.u32 %v1031, 16
        %v1049 = vrot.slane %v1047, 5
        %v1050 = vor.u32 %v1046, %v1049
        %v1051 = vrot.slane %v1050, 4
        %v1053 = vshll.u32 %v1032, 16
        %v1055 = vrot.slane %v1053, 5
        %v1056 = vsel %vm461, %v1051, %v1055
        %v1057 = vshrl.u32 %v1032, 16
        %v1059 = vrot.slane %v1057, 4
        %v1060 = vor.u32 %v1059, %v1055
        %v1061 = vrot.slane %v1060, 4
        %v1063 = vshll.u32 %v1033, 16
        %v1065 = vrot.slane %v1063, 5
        %v1066 = vsel %vm461, %v1061, %v1065
        %v1068 = vshrl.u32 %v1034, 16
        %v1070 = vrot.slane %v1068, 4
        %v1071 = vshll.u32 %v1034, 16
        %v1073 = vrot.slane %v1071, 5
        %v1074 = vor.u32 %v1070, %v1073
        %v1075 = vrot.slane %v1074, 4
        %v1077 = vshll.u32 %v1035, 16
        %v1079 = vrot.slane %v1077, 5
        %v1080 = vsel %vm461, %v1075, %v1079
        %v1081 = vshrl.u32 %v1035, 16
        %v1083 = vrot.slane %v1081, 4
        %v1084 = vor.u32 %v1083, %v1079
        %v1085 = vrot.slane %v1084, 4
        %v1087 = vshll.u32 %v1036, 16
        %v1089 = vrot.slane %v1087, 5
        %v1090 = vsel %vm461, %v1085, %v1089
        %v1092 = vshrl.u32 %v1037, 16
        %v1094 = vrot.slane %v1092, 4
        %v1095 = vshll.u32 %v1037, 16
        %v1097 = vrot.slane %v1095, 5
        %v1098 = vor.u32 %v1094, %v1097
        %v1099 = vrot.slane %v1098, 4
        %v1101 = vshll.u32 %v1038, 16
        %v1103 = vrot.slane %v1101, 5
        %v1104 = vsel %vm461, %v1099, %v1103
        %v1105 = vshrl.u32 %v1038, 16
        %v1107 = vrot.slane %v1105, 4
        %v1108 = vor.u32 %v1107, %v1103
        %v1109 = vrot.slane %v1108, 4
        %v1111 = vshll.u32 %v1039, 16
        %v1113 = vrot.slane %v1111, 5
        %v1114 = vsel %vm461, %v1109, %v1113
        %v1116 = vshrl.u32 %v1040, 16
        %v1118 = vrot.slane %v1116, 4
        %v1119 = vshll.u32 %v1040, 16
        %v1121 = vrot.slane %v1119, 5
        %v1122 = vor.u32 %v1118, %v1121
        %v1123 = vrot.slane %v1122, 4
        %v1125 = vshll.u32 %v1041, 16
        %v1127 = vrot.slane %v1125, 5
        %v1128 = vsel %vm461, %v1123, %v1127
        %v1129 = vshrl.u32 %v1041, 16
        %v1131 = vrot.slane %v1129, 4
        %v1132 = vor.u32 %v1131, %v1127
        %v1133 = vrot.slane %v1132, 4
        %v1135 = vshll.u32 %v1042, 16
        %v1137 = vrot.slane %v1135, 5
        %v1138 = vsel %vm461, %v1133, %v1137
        %s1139 = scalar_lea.vmem %s3, 32
        %v1140 = vld [vmem:[%s1139] sm:$0xf]
        %v1141 = vld [vmem:[%s1139 + $0x4] sm:$0xf]
        %v1142 = vunpack.c.l.b16 %v1056
        %v1143 = vunpack.c.l.b16 %v1066
        %v1144 = vunpack.c.l.b16 %v1080
        %v1145 = vunpack.c.l.b16 %v1090
        %v1146 = vunpack.c.l.b16 %v1104
        %v1147 = vunpack.c.l.b16 %v1114
        %v1148 = vunpack.c.l.b16 %v1128
        %v1149 = vunpack.c.l.b16 %v1138
        %v1150 = vpack.c.b16 %v1143, %v1142
        %v1151 = vpack.c.b16 %v1145, %v1144
        %v1152 = vpack.c.b16 %v1147, %v1146
        %v1153 = vpack.c.b16 %v1149, %v1148
        %v1156 = vunpack.c.l.b16 %v1140
        %v1157 = vunpack.c.l.b16 %v1141
        %v1158 = vpack.c.b16 %v1157, %v1156
        %v1161 = vsel %vm579, %v1150, 0
        %v1164 = vsel %vm579, %v1151, 0
        %v1167 = vsel %vm579, %v1152, 0
        %v1170 = vsel %vm579, %v1153, 0
        %1172 = vmatprep.subr.bf16.mxu0 0
        %1173 = vmatpush1.bf16.msra.mxu0 %v1158
        %1174 = vmatprep.subr.bf16.mxu0 0
        %1175 = vmatpush1.bf16.msra.mxu0 0
        %1176 = vmatprep.subr.bf16.mxu0 0
        %1177 = vmatpush1.bf16.msra.mxu0 0
        %1178 = vmatprep.subr.bf16.mxu0 0
        %1179 = vmatpush1.bf16.msra.mxu0 0
        %1180 = vmatprep.subr.bf16.mxu0 0
        %1181 = vmatpush1.bf16.msra.mxu0 0
        %1182 = vmatprep.subr.bf16.mxu0 0
        %1183 = vmatpush1.bf16.msra.mxu0 0
        %1184 = vmatprep.subr.bf16.mxu0 0
        %1185 = vmatpush1.bf16.msra.mxu0 0
        %1186 = vmatprep.subr.bf16.mxu0 0
        %1187 = vmatpush1.bf16.msra.mxu0 0
        %1188 = vmatprep.subr.bf16.mxu0 0
        %1189 = vmatpush1.bf16.msra.mxu0 0
        %1190 = vmatprep.subr.bf16.mxu0 0
        %1191 = vmatpush1.bf16.msra.mxu0 0
        %1192 = vmatprep.subr.bf16.mxu0 0
        %1193 = vmatpush1.bf16.msra.mxu0 0
        %1194 = vmatprep.subr.bf16.mxu0 0
        %1195 = vmatpush1.bf16.msra.mxu0 0
        %1196 = vmatprep.subr.bf16.mxu0 0
        %1197 = vmatpush1.bf16.msra.mxu0 0
        %1198 = vmatprep.subr.bf16.mxu0 0
        %1199 = vmatpush1.bf16.msra.mxu0 0
        %1200 = vmatprep.subr.bf16.mxu0 0
        %1201 = vmatpush1.bf16.msra.mxu0 0
        %1202 = vmatprep.subr.bf16.mxu0 0
        %1203 = vmatpush1.bf16.msra.mxu0 0
        %1204 = vmatprep.mubr.bf16.mxu0 0
        %1205 = vmatmul.mubr.bf16.gmra.mrb[0].mxu0 %v1161
        %v1206 = vpop.f32.mrb[0].mxu0
        %v1207 = vadd.f32 0.0, %v1206
        %v1208 = vpop.f32.mrb[0].mxu0
        %v1209 = vpop.f32.mrb[0].mxu0
        %v1210 = vadd.f32 0.0, %v1209
        %v1211 = vpop.f32.mrb[0].mxu0
        %1212 = vmatprep.mubr.bf16.mxu0 0
        %1213 = vmatmul.mubr.bf16.gmra.mrb[0].mxu0 %v1164
        %v1214 = vpop.f32.mrb[0].mxu0
        %v1215 = vadd.f32 0.0, %v1214
        %v1216 = vpop.f32.mrb[0].mxu0
        %v1217 = vpop.f32.mrb[0].mxu0
        %v1218 = vadd.f32 0.0, %v1217
        %v1219 = vpop.f32.mrb[0].mxu0
        %1220 = vmatprep.mubr.bf16.mxu0 0
        %1221 = vmatmul.mubr.bf16.gmra.mrb[0].mxu0 %v1167
        %v1222 = vpop.f32.mrb[0].mxu0
        %v1223 = vadd.f32 0.0, %v1222
        %v1224 = vpop.f32.mrb[0].mxu0
        %v1225 = vpop.f32.mrb[0].mxu0
        %v1226 = vadd.f32 0.0, %v1225
        %v1227 = vpop.f32.mrb[0].mxu0
        %1228 = vmatprep.mubr.bf16.mxu0 0
        %1229 = vmatmul.mubr.bf16.gmra.mrb[0].mxu0 %v1170
        %v1230 = vpop.f32.mrb[0].mxu0
        %v1231 = vadd.f32 0.0, %v1230
        %v1232 = vpop.f32.mrb[0].mxu0
        %v1233 = vpop.f32.mrb[0].mxu0
        %v1234 = vadd.f32 0.0, %v1233
        %v1235 = vpop.f32.mrb[0].mxu0
        %1236 = vdwg.mxu0
        %v1237 = vadd.f32 %v1023, %v1207
        %v1238 = vadd.f32 %v1024, %v1210
        %v1239 = vadd.f32 %v1025, %v1215
        %v1240 = vadd.f32 %v1026, %v1218
        %v1241 = vadd.f32 %v1027, %v1223
        %v1242 = vadd.f32 %v1028, %v1226
        %v1243 = vadd.f32 %v1029, %v1231
        %v1244 = vadd.f32 %v1030, %v1234
        %v1245 = vld [vmem:[%s394] sm:$0xe]
        %v1246 = vld [vmem:[%s394 + $0xc] sm:$0xe]
        %v1247 = vld [vmem:[%s394 + $0x18] sm:$0xe]
        %v1248 = vld [vmem:[%s394 + $0x24] sm:$0xe]
        %v1261 = vrot.slane %v1245, 5
        %v1262 = vrot.slane %v1261, 4
        %v1263 = vrot.slane %v1032, 5
        %v1264 = vsel %vm774, %v1262, %v1263
        %v1265 = vrot.slane %v1263, 4
        %v1266 = vrot.slane %v1033, 5
        %v1267 = vsel %vm774, %v1265, %v1266
        %v1268 = vrot.slane %v1246, 5
        %v1269 = vrot.slane %v1268, 4
        %v1270 = vrot.slane %v1035, 5
        %v1271 = vsel %vm774, %v1269, %v1270
        %v1272 = vrot.slane %v1270, 4
        %v1273 = vrot.slane %v1036, 5
        %v1274 = vsel %vm774, %v1272, %v1273
        %v1275 = vrot.slane %v1247, 5
        %v1276 = vrot.slane %v1275, 4
        %v1277 = vrot.slane %v1038, 5
        %v1278 = vsel %vm774, %v1276, %v1277
        %v1279 = vrot.slane %v1277, 4
        %v1280 = vrot.slane %v1039, 5
        %v1281 = vsel %vm774, %v1279, %v1280
        %v1282 = vrot.slane %v1248, 5
        %v1283 = vrot.slane %v1282, 4
        %v1284 = vrot.slane %v1041, 5
        %v1285 = vsel %vm774, %v1283, %v1284
        %v1286 = vrot.slane %v1284, 4
        %v1287 = vrot.slane %v1042, 5
        %v1288 = vsel %vm774, %v1286, %v1287
        %s1289 = scalar_lea.vmem %s3, 40
        %v1290 = vld [vmem:[%s1289] sm:$0xf]
        %v1291 = vld [vmem:[%s1289 + $0x4] sm:$0xf]
        %v1292 = vunpack.c.l.b16 %v1264
        %v1293 = vunpack.c.l.b16 %v1267
        %v1294 = vunpack.c.l.b16 %v1271
        %v1295 = vunpack.c.l.b16 %v1274
        %v1296 = vunpack.c.l.b16 %v1278
        %v1297 = vunpack.c.l.b16 %v1281
        %v1298 = vunpack.c.l.b16 %v1285
        %v1299 = vunpack.c.l.b16 %v1288
        %v1300 = vpack.c.b16 %v1293, %v1292
        %v1301 = vpack.c.b16 %v1295, %v1294
        %v1302 = vpack.c.b16 %v1297, %v1296
        %v1303 = vpack.c.b16 %v1299, %v1298
        %v1306 = vunpack.c.l.b16 %v1290
        %v1307 = vunpack.c.l.b16 %v1291
        %v1308 = vpack.c.b16 %v1307, %v1306
        %v1311 = vsel %vm579, %v1300, 0
        %v1314 = vsel %vm579, %v1301, 0
        %v1317 = vsel %vm579, %v1302, 0
        %v1320 = vsel %vm579, %v1303, 0
        %1322 = vmatprep.subr.bf16.mxu0 0
        %1323 = vmatpush1.bf16.msra.mxu0 %v1308
        %1324 = vmatprep.subr.bf16.mxu0 0
        %1325 = vmatpush1.bf16.msra.mxu0 0
        %1326 = vmatprep.subr.bf16.mxu0 0
        %1327 = vmatpush1.bf16.msra.mxu0 0
        %1328 = vmatprep.subr.bf16.mxu0 0
        %1329 = vmatpush1.bf16.msra.mxu0 0
        %1330 = vmatprep.subr.bf16.mxu0 0
        %1331 = vmatpush1.bf16.msra.mxu0 0
        %1332 = vmatprep.subr.bf16.mxu0 0
        %1333 = vmatpush1.bf16.msra.mxu0 0
        %1334 = vmatprep.subr.bf16.mxu0 0
        %1335 = vmatpush1.bf16.msra.mxu0 0
        %1336 = vmatprep.subr.bf16.mxu0 0
        %1337 = vmatpush1.bf16.msra.mxu0 0
        %1338 = vmatprep.subr.bf16.mxu0 0
        %1339 = vmatpush1.bf16.msra.mxu0 0
        %1340 = vmatprep.subr.bf16.mxu0 0
        %1341 = vmatpush1.bf16.msra.mxu0 0
        %1342 = vmatprep.subr.bf16.mxu0 0
        %1343 = vmatpush1.bf16.msra.mxu0 0
        %1344 = vmatprep.subr.bf16.mxu0 0
        %1345 = vmatpush1.bf16.msra.mxu0 0
        %1346 = vmatprep.subr.bf16.mxu0 0
        %1347 = vmatpush1.bf16.msra.mxu0 0
        %1348 = vmatprep.subr.bf16.mxu0 0
        %1349 = vmatpush1.bf16.msra.mxu0 0
        %1350 = vmatprep.subr.bf16.mxu0 0
        %1351 = vmatpush1.bf16.msra.mxu0 0
        %1352 = vmatprep.subr.bf16.mxu0 0
        %1353 = vmatpush1.bf16.msra.mxu0 0
        %1354 = vmatprep.mubr.bf16.mxu0 0
        %1355 = vmatmul.mubr.bf16.gmra.mrb[0].mxu0 %v1311
        %v1356 = vpop.f32.mrb[0].mxu0
        %v1357 = vadd.f32 0.0, %v1356
        %v1358 = vpop.f32.mrb[0].mxu0
        %v1359 = vpop.f32.mrb[0].mxu0
        %v1360 = vadd.f32 0.0, %v1359
        %v1361 = vpop.f32.mrb[0].mxu0
        %1362 = vmatprep.mubr.bf16.mxu0 0
        %1363 = vmatmul.mubr.bf16.gmra.mrb[0].mxu0 %v1314
        %v1364 = vpop.f32.mrb[0].mxu0
        %v1365 = vadd.f32 0.0, %v1364
        %v1366 = vpop.f32.mrb[0].mxu0
        %v1367 = vpop.f32.mrb[0].mxu0
        %v1368 = vadd.f32 0.0, %v1367
        %v1369 = vpop.f32.mrb[0].mxu0
        %1370 = vmatprep.mubr.bf16.mxu0 0
        %1371 = vmatmul.mubr.bf16.gmra.mrb[0].mxu0 %v1317
        %v1372 = vpop.f32.mrb[0].mxu0
        %v1373 = vadd.f32 0.0, %v1372
        %v1374 = vpop.f32.mrb[0].mxu0
        %v1375 = vpop.f32.mrb[0].mxu0
        %v1376 = vadd.f32 0.0, %v1375
        %v1377 = vpop.f32.mrb[0].mxu0
        %1378 = vmatprep.mubr.bf16.mxu0 0
        %1379 = vmatmul.mubr.bf16.gmra.mrb[0].mxu0 %v1320
        %v1380 = vpop.f32.mrb[0].mxu0
        %v1381 = vadd.f32 0.0, %v1380
        %v1382 = vpop.f32.mrb[0].mxu0
        %v1383 = vpop.f32.mrb[0].mxu0
        %v1384 = vadd.f32 0.0, %v1383
        %v1385 = vpop.f32.mrb[0].mxu0
        %1386 = vdwg.mxu0
        %v1387 = vadd.f32 %v1237, %v1357
        %v1388 = vadd.f32 %v1238, %v1360
        %v1389 = vadd.f32 %v1239, %v1365
        %v1390 = vadd.f32 %v1240, %v1368
        %v1391 = vadd.f32 %v1241, %v1373
        %v1392 = vadd.f32 %v1242, %v1376
        %v1393 = vadd.f32 %v1243, %v1381
        %v1394 = vadd.f32 %v1244, %v1384
        %s1395 = scalar_lea.vmem [#allocation2], 24
        %v1396 = vld [vmem:[%s1395] sm:$0xf]
        %v1397 = vld [vmem:[%s1395 + $0x4] sm:$0xf]
        %v1398 = vld [vmem:[%s1395 + $0xc] sm:$0xf]
        %v1399 = vld [vmem:[%s1395 + $0x10] sm:$0xf]
        %v1400 = vld [vmem:[%s1395 + $0x18] sm:$0xf]
        %v1401 = vld [vmem:[%s1395 + $0x1c] sm:$0xf]
        %v1402 = vld [vmem:[%s1395 + $0x24] sm:$0xf]
        %v1403 = vld [vmem:[%s1395 + $0x28] sm:$0xf]
        %s1404 = scalar_lea.vmem %s3, 48
        %v1405 = vld [vmem:[%s1404] sm:$0xf]
        %v1406 = vld [vmem:[%s1404 + $0x4] sm:$0xf]
        %v1415 = vunpack.c.l.b16 %v1396
        %v1416 = vunpack.c.l.b16 %v1397
        %v1417 = vunpack.c.l.b16 %v1398
        %v1418 = vunpack.c.l.b16 %v1399
        %v1419 = vunpack.c.l.b16 %v1400
        %v1420 = vunpack.c.l.b16 %v1401
        %v1421 = vunpack.c.l.b16 %v1402
        %v1422 = vunpack.c.l.b16 %v1403
        %v1423 = vpack.c.b16 %v1416, %v1415
        %v1424 = vpack.c.b16 %v1418, %v1417
        %v1425 = vpack.c.b16 %v1420, %v1419
        %v1426 = vpack.c.b16 %v1422, %v1421
        %v1429 = vunpack.c.l.b16 %v1405
        %v1430 = vunpack.c.l.b16 %v1406
        %v1431 = vpack.c.b16 %v1430, %v1429
        %v1434 = vsel %vm579, %v1423, 0
        %v1437 = vsel %vm579, %v1424, 0
        %v1440 = vsel %vm579, %v1425, 0
        %v1443 = vsel %vm579, %v1426, 0
        %1445 = vmatprep.subr.bf16.mxu0 0
        %1446 = vmatpush1.bf16.msra.mxu0 %v1431
        %1447 = vmatprep.subr.bf16.mxu0 0
        %1448 = vmatpush1.bf16.msra.mxu0 0
        %1449 = vmatprep.subr.bf16.mxu0 0
        %1450 = vmatpush1.bf16.msra.mxu0 0
        %1451 = vmatprep.subr.bf16.mxu0 0
        %1452 = vmatpush1.bf16.msra.mxu0 0
        %1453 = vmatprep.subr.bf16.mxu0 0
        %1454 = vmatpush1.bf16.msra.mxu0 0
        %1455 = vmatprep.subr.bf16.mxu0 0
        %1456 = vmatpush1.bf16.msra.mxu0 0
        %1457 = vmatprep.subr.bf16.mxu0 0
        %1458 = vmatpush1.bf16.msra.mxu0 0
        %1459 = vmatprep.subr.bf16.mxu0 0
        %1460 = vmatpush1.bf16.msra.mxu0 0
        %1461 = vmatprep.subr.bf16.mxu0 0
        %1462 = vmatpush1.bf16.msra.mxu0 0
        %1463 = vmatprep.subr.bf16.mxu0 0
        %1464 = vmatpush1.bf16.msra.mxu0 0
        %1465 = vmatprep.subr.bf16.mxu0 0
        %1466 = vmatpush1.bf16.msra.mxu0 0
        %1467 = vmatprep.subr.bf16.mxu0 0
        %1468 = vmatpush1.bf16.msra.mxu0 0
        %1469 = vmatprep.subr.bf16.mxu0 0
        %1470 = vmatpush1.bf16.msra.mxu0 0
        %1471 = vmatprep.subr.bf16.mxu0 0
        %1472 = vmatpush1.bf16.msra.mxu0 0
        %1473 = vmatprep.subr.bf16.mxu0 0
        %1474 = vmatpush1.bf16.msra.mxu0 0
        %1475 = vmatprep.subr.bf16.mxu0 0
        %1476 = vmatpush1.bf16.msra.mxu0 0
        %1477 = vmatprep.mubr.bf16.mxu0 0
        %1478 = vmatmul.mubr.bf16.gmra.mrb[0].mxu0 %v1434
        %v1479 = vpop.f32.mrb[0].mxu0
        %v1480 = vadd.f32 0.0, %v1479
        %v1481 = vpop.f32.mrb[0].mxu0
        %v1482 = vpop.f32.mrb[0].mxu0
        %v1483 = vadd.f32 0.0, %v1482
        %v1484 = vpop.f32.mrb[0].mxu0
        %1485 = vmatprep.mubr.bf16.mxu0 0
        %1486 = vmatmul.mubr.bf16.gmra.mrb[0].mxu0 %v1437
        %v1487 = vpop.f32.mrb[0].mxu0
        %v1488 = vadd.f32 0.0, %v1487
        %v1489 = vpop.f32.mrb[0].mxu0
        %v1490 = vpop.f32.mrb[0].mxu0
        %v1491 = vadd.f32 0.0, %v1490
        %v1492 = vpop.f32.mrb[0].mxu0
        %1493 = vmatprep.mubr.bf16.mxu0 0
        %1494 = vmatmul.mubr.bf16.gmra.mrb[0].mxu0 %v1440
        %v1495 = vpop.f32.mrb[0].mxu0
        %v1496 = vadd.f32 0.0, %v1495
        %v1497 = vpop.f32.mrb[0].mxu0
        %v1498 = vpop.f32.mrb[0].mxu0
        %v1499 = vadd.f32 0.0, %v1498
        %v1500 = vpop.f32.mrb[0].mxu0
        %1501 = vmatprep.mubr.bf16.mxu0 0
        %1502 = vmatmul.mubr.bf16.gmra.mrb[0].mxu0 %v1443
        %v1503 = vpop.f32.mrb[0].mxu0
        %v1504 = vadd.f32 0.0, %v1503
        %v1505 = vpop.f32.mrb[0].mxu0
        %v1506 = vpop.f32.mrb[0].mxu0
        %v1507 = vadd.f32 0.0, %v1506
        %v1508 = vpop.f32.mrb[0].mxu0
        %1509 = vdwg.mxu0
        %v1510 = vadd.f32 %v1387, %v1480
        %v1511 = vadd.f32 %v1388, %v1483
        %v1512 = vadd.f32 %v1389, %v1488
        %v1513 = vadd.f32 %v1390, %v1491
        %v1514 = vadd.f32 %v1391, %v1496
        %v1515 = vadd.f32 %v1392, %v1499
        %v1516 = vadd.f32 %v1393, %v1504
        %v1517 = vadd.f32 %v1394, %v1507
        %v1518 = vld [vmem:[%s1395] sm:$0xf]
        %v1519 = vld [vmem:[%s1395 + $0x4] sm:$0xf]
        %v1520 = vld [vmem:[%s1395 + $0x8] sm:$0x1]
        %v1521 = vld [vmem:[%s1395 + $0xc] sm:$0xf]
        %v1522 = vld [vmem:[%s1395 + $0x10] sm:$0xf]
        %v1523 = vld [vmem:[%s1395 + $0x14] sm:$0x1]
        %v1524 = vld [vmem:[%s1395 + $0x18] sm:$0xf]
        %v1525 = vld [vmem:[%s1395 + $0x1c] sm:$0xf]
        %v1526 = vld [vmem:[%s1395 + $0x20] sm:$0x1]
        %v1527 = vld [vmem:[%s1395 + $0x24] sm:$0xf]
        %v1528 = vld [vmem:[%s1395 + $0x28] sm:$0xf]
        %v1529 = vld [vmem:[%s1395 + $0x2c] sm:$0x1]
        %v1531 = vshrl.u32 %v1518, 16
        %v1533 = vrot.slane %v1531, 4
        %v1534 = vshll.u32 %v1518, 16
        %v1536 = vrot.slane %v1534, 5
        %v1537 = vor.u32 %v1533, %v1536
        %v1538 = vrot.slane %v1537, 4
        %v1540 = vshll.u32 %v1519, 16
        %v1542 = vrot.slane %v1540, 5
        %v1543 = vsel %vm461, %v1538, %v1542
        %v1544 = vshrl.u32 %v1519, 16
        %v1546 = vrot.slane %v1544, 4
        %v1547 = vor.u32 %v1546, %v1542
        %v1548 = vrot.slane %v1547, 4
        %v1550 = vshll.u32 %v1520, 16
        %v1552 = vrot.slane %v1550, 5
        %v1553 = vsel %vm461, %v1548, %v1552
        %v1555 = vshrl.u32 %v1521, 16
        %v1557 = vrot.slane %v1555, 4
        %v1558 = vshll.u32 %v1521, 16
        %v1560 = vrot.slane %v1558, 5
        %v1561 = vor.u32 %v1557, %v1560
        %v1562 = vrot.slane %v1561, 4
        %v1564 = vshll.u32 %v1522, 16
        %v1566 = vrot.slane %v1564, 5
        %v1567 = vsel %vm461, %v1562, %v1566
        %v1568 = vshrl.u32 %v1522, 16
        %v1570 = vrot.slane %v1568, 4
        %v1571 = vor.u32 %v1570, %v1566
        %v1572 = vrot.slane %v1571, 4
        %v1574 = vshll.u32 %v1523, 16
        %v1576 = vrot.slane %v1574, 5
        %v1577 = vsel %vm461, %v1572, %v1576
        %v1579 = vshrl.u32 %v1524, 16
        %v1581 = vrot.slane %v1579, 4
        %v1582 = vshll.u32 %v1524, 16
        %v1584 = vrot.slane %v1582, 5
        %v1585 = vor.u32 %v1581, %v1584
        %v1586 = vrot.slane %v1585, 4
        %v1588 = vshll.u32 %v1525, 16
        %v1590 = vrot.slane %v1588, 5
        %v1591 = vsel %vm461, %v1586, %v1590
        %v1592 = vshrl.u32 %v1525, 16
        %v1594 = vrot.slane %v1592, 4
        %v1595 = vor.u32 %v1594, %v1590
        %v1596 = vrot.slane %v1595, 4
        %v1598 = vshll.u32 %v1526, 16
        %v1600 = vrot.slane %v1598, 5
        %v1601 = vsel %vm461, %v1596, %v1600
        %v1603 = vshrl.u32 %v1527, 16
        %v1605 = vrot.slane %v1603, 4
        %v1606 = vshll.u32 %v1527, 16
        %v1608 = vrot.slane %v1606, 5
        %v1609 = vor.u32 %v1605, %v1608
        %v1610 = vrot.slane %v1609, 4
        %v1612 = vshll.u32 %v1528, 16
        %v1614 = vrot.slane %v1612, 5
        %v1615 = vsel %vm461, %v1610, %v1614
        %v1616 = vshrl.u32 %v1528, 16
        %v1618 = vrot.slane %v1616, 4
        %v1619 = vor.u32 %v1618, %v1614
        %v1620 = vrot.slane %v1619, 4
        %v1622 = vshll.u32 %v1529, 16
        %v1624 = vrot.slane %v1622, 5
        %v1625 = vsel %vm461, %v1620, %v1624
        %s1626 = scalar_lea.vmem %s3, 56
        %v1627 = vld [vmem:[%s1626] sm:$0xf]
        %v1628 = vld [vmem:[%s1626 + $0x4] sm:$0xf]
        %v1629 = vunpack.c.l.b16 %v1543
        %v1630 = vunpack.c.l.b16 %v1553
        %v1631 = vunpack.c.l.b16 %v1567
        %v1632 = vunpack.c.l.b16 %v1577
        %v1633 = vunpack.c.l.b16 %v1591
        %v1634 = vunpack.c.l.b16 %v1601
        %v1635 = vunpack.c.l.b16 %v1615
        %v1636 = vunpack.c.l.b16 %v1625
        %v1637 = vpack.c.b16 %v1630, %v1629
        %v1638 = vpack.c.b16 %v1632, %v1631
        %v1639 = vpack.c.b16 %v1634, %v1633
        %v1640 = vpack.c.b16 %v1636, %v1635
        %v1643 = vunpack.c.l.b16 %v1627
        %v1644 = vunpack.c.l.b16 %v1628
        %v1645 = vpack.c.b16 %v1644, %v1643
        %v1648 = vsel %vm579, %v1637, 0
        %v1651 = vsel %vm579, %v1638, 0
        %v1654 = vsel %vm579, %v1639, 0
        %v1657 = vsel %vm579, %v1640, 0
        %1659 = vmatprep.subr.bf16.mxu0 0
        %1660 = vmatpush1.bf16.msra.mxu0 %v1645
        %1661 = vmatprep.subr.bf16.mxu0 0
        %1662 = vmatpush1.bf16.msra.mxu0 0
        %1663 = vmatprep.subr.bf16.mxu0 0
        %1664 = vmatpush1.bf16.msra.mxu0 0
        %1665 = vmatprep.subr.bf16.mxu0 0
        %1666 = vmatpush1.bf16.msra.mxu0 0
        %1667 = vmatprep.subr.bf16.mxu0 0
        %1668 = vmatpush1.bf16.msra.mxu0 0
        %1669 = vmatprep.subr.bf16.mxu0 0
        %1670 = vmatpush1.bf16.msra.mxu0 0
        %1671 = vmatprep.subr.bf16.mxu0 0
        %1672 = vmatpush1.bf16.msra.mxu0 0
        %1673 = vmatprep.subr.bf16.mxu0 0
        %1674 = vmatpush1.bf16.msra.mxu0 0
        %1675 = vmatprep.subr.bf16.mxu0 0
        %1676 = vmatpush1.bf16.msra.mxu0 0
        %1677 = vmatprep.subr.bf16.mxu0 0
        %1678 = vmatpush1.bf16.msra.mxu0 0
        %1679 = vmatprep.subr.bf16.mxu0 0
        %1680 = vmatpush1.bf16.msra.mxu0 0
        %1681 = vmatprep.subr.bf16.mxu0 0
        %1682 = vmatpush1.bf16.msra.mxu0 0
        %1683 = vmatprep.subr.bf16.mxu0 0
        %1684 = vmatpush1.bf16.msra.mxu0 0
        %1685 = vmatprep.subr.bf16.mxu0 0
        %1686 = vmatpush1.bf16.msra.mxu0 0
        %1687 = vmatprep.subr.bf16.mxu0 0
        %1688 = vmatpush1.bf16.msra.mxu0 0
        %1689 = vmatprep.subr.bf16.mxu0 0
        %1690 = vmatpush1.bf16.msra.mxu0 0
        %1691 = vmatprep.mubr.bf16.mxu0 0
        %1692 = vmatmul.mubr.bf16.gmra.mrb[0].mxu0 %v1648
        %v1693 = vpop.f32.mrb[0].mxu0
        %v1694 = vadd.f32 0.0, %v1693
        %v1695 = vpop.f32.mrb[0].mxu0
        %v1696 = vpop.f32.mrb[0].mxu0
        %v1697 = vadd.f32 0.0, %v1696
        %v1698 = vpop.f32.mrb[0].mxu0
        %1699 = vmatprep.mubr.bf16.mxu0 0
        %1700 = vmatmul.mubr.bf16.gmra.mrb[0].mxu0 %v1651
        %v1701 = vpop.f32.mrb[0].mxu0
        %v1702 = vadd.f32 0.0, %v1701
        %v1703 = vpop.f32.mrb[0].mxu0
        %v1704 = vpop.f32.mrb[0].mxu0
        %v1705 = vadd.f32 0.0, %v1704
        %v1706 = vpop.f32.mrb[0].mxu0
        %1707 = vmatprep.mubr.bf16.mxu0 0
        %1708 = vmatmul.mubr.bf16.gmra.mrb[0].mxu0 %v1654
        %v1709 = vpop.f32.mrb[0].mxu0
        %v1710 = vadd.f32 0.0, %v1709
        %v1711 = vpop.f32.mrb[0].mxu0
        %v1712 = vpop.f32.mrb[0].mxu0
        %v1713 = vadd.f32 0.0, %v1712
        %v1714 = vpop.f32.mrb[0].mxu0
        %1715 = vmatprep.mubr.bf16.mxu0 0
        %1716 = vmatmul.mubr.bf16.gmra.mrb[0].mxu0 %v1657
        %v1717 = vpop.f32.mrb[0].mxu0
        %v1718 = vadd.f32 0.0, %v1717
        %v1719 = vpop.f32.mrb[0].mxu0
        %v1720 = vpop.f32.mrb[0].mxu0
        %v1721 = vadd.f32 0.0, %v1720
        %v1722 = vpop.f32.mrb[0].mxu0
        %1723 = vdwg.mxu0
        %v1724 = vadd.f32 %v1510, %v1694
        %v1725 = vadd.f32 %v1511, %v1697
        %v1726 = vadd.f32 %v1512, %v1702
        %v1727 = vadd.f32 %v1513, %v1705
        %v1728 = vadd.f32 %v1514, %v1710
        %v1729 = vadd.f32 %v1515, %v1713
        %v1730 = vadd.f32 %v1516, %v1718
        %v1731 = vadd.f32 %v1517, %v1721
        %v1732 = vld [vmem:[%s1395] sm:$0xe]
        %v1733 = vld [vmem:[%s1395 + $0xc] sm:$0xe]
        %v1734 = vld [vmem:[%s1395 + $0x18] sm:$0xe]
        %v1735 = vld [vmem:[%s1395 + $0x24] sm:$0xe]
        %v1748 = vrot.slane %v1732, 5
        %v1749 = vrot.slane %v1748, 4
        %v1750 = vrot.slane %v1519, 5
        %v1751 = vsel %vm774, %v1749, %v1750
        %v1752 = vrot.slane %v1750, 4
        %v1753 = vrot.slane %v1520, 5
        %v1754 = vsel %vm774, %v1752, %v1753
        %v1755 = vrot.slane %v1733, 5
        %v1756 = vrot.slane %v1755, 4
        %v1757 = vrot.slane %v1522, 5
        %v1758 = vsel %vm774, %v1756, %v1757
        %v1759 = vrot.slane %v1757, 4
        %v1760 = vrot.slane %v1523, 5
        %v1761 = vsel %vm774, %v1759, %v1760
        %v1762 = vrot.slane %v1734, 5
        %v1763 = vrot.slane %v1762, 4
        %v1764 = vrot.slane %v1525, 5
        %v1765 = vsel %vm774, %v1763, %v1764
        %v1766 = vrot.slane %v1764, 4
        %v1767 = vrot.slane %v1526, 5
        %v1768 = vsel %vm774, %v1766, %v1767
        %v1769 = vrot.slane %v1735, 5
        %v1770 = vrot.slane %v1769, 4
        %v1771 = vrot.slane %v1528, 5
        %v1772 = vsel %vm774, %v1770, %v1771
        %v1773 = vrot.slane %v1771, 4
        %v1774 = vrot.slane %v1529, 5
        %v1775 = vsel %vm774, %v1773, %v1774
        %s1776 = scalar_lea.vmem %s3, 64
        %v1777 = vld [vmem:[%s1776] sm:$0xf]
        %v1778 = vld [vmem:[%s1776 + $0x4] sm:$0xf]
        %v1779 = vunpack.c.l.b16 %v1751
        %v1780 = vunpack.c.l.b16 %v1754
        %v1781 = vunpack.c.l.b16 %v1758
        %v1782 = vunpack.c.l.b16 %v1761
        %v1783 = vunpack.c.l.b16 %v1765
        %v1784 = vunpack.c.l.b16 %v1768
        %v1785 = vunpack.c.l.b16 %v1772
        %v1786 = vunpack.c.l.b16 %v1775
        %v1787 = vpack.c.b16 %v1780, %v1779
        %v1788 = vpack.c.b16 %v1782, %v1781
        %v1789 = vpack.c.b16 %v1784, %v1783
        %v1790 = vpack.c.b16 %v1786, %v1785
        %v1793 = vunpack.c.l.b16 %v1777
        %v1794 = vunpack.c.l.b16 %v1778
        %v1795 = vpack.c.b16 %v1794, %v1793
        %v1798 = vsel %vm579, %v1787, 0
        %v1801 = vsel %vm579, %v1788, 0
        %v1804 = vsel %vm579, %v1789, 0
        %v1807 = vsel %vm579, %v1790, 0
        %1809 = vmatprep.subr.bf16.mxu0 0
        %1810 = vmatpush1.bf16.msra.mxu0 %v1795
        %1811 = vmatprep.subr.bf16.mxu0 0
        %1812 = vmatpush1.bf16.msra.mxu0 0
        %1813 = vmatprep.subr.bf16.mxu0 0
        %1814 = vmatpush1.bf16.msra.mxu0 0
        %1815 = vmatprep.subr.bf16.mxu0 0
        %1816 = vmatpush1.bf16.msra.mxu0 0
        %1817 = vmatprep.subr.bf16.mxu0 0
        %1818 = vmatpush1.bf16.msra.mxu0 0
        %1819 = vmatprep.subr.bf16.mxu0 0
        %1820 = vmatpush1.bf16.msra.mxu0 0
        %1821 = vmatprep.subr.bf16.mxu0 0
        %1822 = vmatpush1.bf16.msra.mxu0 0
        %1823 = vmatprep.subr.bf16.mxu0 0
        %1824 = vmatpush1.bf16.msra.mxu0 0
        %1825 = vmatprep.subr.bf16.mxu0 0
        %1826 = vmatpush1.bf16.msra.mxu0 0
        %1827 = vmatprep.subr.bf16.mxu0 0
        %1828 = vmatpush1.bf16.msra.mxu0 0
        %1829 = vmatprep.subr.bf16.mxu0 0
        %1830 = vmatpush1.bf16.msra.mxu0 0
        %1831 = vmatprep.subr.bf16.mxu0 0
        %1832 = vmatpush1.bf16.msra.mxu0 0
        %1833 = vmatprep.subr.bf16.mxu0 0
        %1834 = vmatpush1.bf16.msra.mxu0 0
        %1835 = vmatprep.subr.bf16.mxu0 0
        %1836 = vmatpush1.bf16.msra.mxu0 0
        %1837 = vmatprep.subr.bf16.mxu0 0
        %1838 = vmatpush1.bf16.msra.mxu0 0
        %1839 = vmatprep.subr.bf16.mxu0 0
        %1840 = vmatpush1.bf16.msra.mxu0 0
        %1841 = vmatprep.mubr.bf16.mxu0 0
        %1842 = vmatmul.mubr.bf16.gmra.mrb[0].mxu0 %v1798
        %v1843 = vpop.f32.mrb[0].mxu0
        %v1844 = vadd.f32 0.0, %v1843
        %v1845 = vpop.f32.mrb[0].mxu0
        %v1846 = vpop.f32.mrb[0].mxu0
        %v1847 = vadd.f32 0.0, %v1846
        %v1848 = vpop.f32.mrb[0].mxu0
        %1849 = vmatprep.mubr.bf16.mxu0 0
        %1850 = vmatmul.mubr.bf16.gmra.mrb[0].mxu0 %v1801
        %v1851 = vpop.f32.mrb[0].mxu0
        %v1852 = vadd.f32 0.0, %v1851
        %v1853 = vpop.f32.mrb[0].mxu0
        %v1854 = vpop.f32.mrb[0].mxu0
        %v1855 = vadd.f32 0.0, %v1854
        %v1856 = vpop.f32.mrb[0].mxu0
        %1857 = vmatprep.mubr.bf16.mxu0 0
        %1858 = vmatmul.mubr.bf16.gmra.mrb[0].mxu0 %v1804
        %v1859 = vpop.f32.mrb[0].mxu0
        %v1860 = vadd.f32 0.0, %v1859
        %v1861 = vpop.f32.mrb[0].mxu0
        %v1862 = vpop.f32.mrb[0].mxu0
        %v1863 = vadd.f32 0.0, %v1862
        %v1864 = vpop.f32.mrb[0].mxu0
        %1865 = vmatprep.mubr.bf16.mxu0 0
        %1866 = vmatmul.mubr.bf16.gmra.mrb[0].mxu0 %v1807
        %v1867 = vpop.f32.mrb[0].mxu0
        %v1868 = vadd.f32 0.0, %v1867
        %v1869 = vpop.f32.mrb[0].mxu0
        %v1870 = vpop.f32.mrb[0].mxu0
        %v1871 = vadd.f32 0.0, %v1870
        %v1872 = vpop.f32.mrb[0].mxu0
        %1873 = vdwg.mxu0
        %v1874 = vadd.f32 %v1724, %v1844
        %v1875 = vadd.f32 %v1725, %v1847
        %v1876 = vadd.f32 %v1726, %v1852
        %v1877 = vadd.f32 %v1727, %v1855
        %v1878 = vadd.f32 %v1728, %v1860
        %v1879 = vadd.f32 %v1729, %v1863
        %v1880 = vadd.f32 %v1730, %v1868
        %v1881 = vadd.f32 %v1731, %v1871
        %v1882 = vld [vmem:[%s4] sm:$0x1]
        %v1884 = vlaneseq
        %v1885 = vshrl.u32 %v1884, 7
        %v1886 = vsub.s32 0, %v1885
        %v1887 = vrot.slane %v1882, %v1886
        %v1889 = vadd.f32 %v1874, %v1887
        %v1890 = vadd.f32 %v1875, %v1887
        %v1891 = vadd.f32 %v1876, %v1887
        %v1892 = vadd.f32 %v1877, %v1887
        %v1893 = vadd.f32 %v1878, %v1887
        %v1894 = vadd.f32 %v1879, %v1887
        %v1895 = vadd.f32 %v1880, %v1887
        %v1896 = vadd.f32 %v1881, %v1887
        %v1897 = vmax.f32 %v1889, 0.0
        %v1898 = vmax.f32 %v1890, 0.0
        %v1899 = vmax.f32 %v1891, 0.0
        %v1900 = vmax.f32 %v1892, 0.0
        %v1901 = vmax.f32 %v1893, 0.0
        %v1902 = vmax.f32 %v1894, 0.0
        %v1903 = vmax.f32 %v1895, 0.0
        %v1904 = vmax.f32 %v1896, 0.0
        %v1905 = vpack.c.bf16 %v1898, %v1897
        %v1906 = vpack.c.bf16 %v1900, %v1899
        %v1907 = vpack.c.bf16 %v1902, %v1901
        %v1908 = vpack.c.bf16 %v1904, %v1903
        %v1913 = vunpack.c.l.b16 %v1905
        %v1914 = vunpack.c.h.b16 %v1905
        %v1915 = vunpack.c.l.b16 %v1906
        %v1916 = vunpack.c.h.b16 %v1906
        %v1917 = vunpack.c.l.b16 %v1907
        %v1918 = vunpack.c.h.b16 %v1907
        %v1919 = vunpack.c.l.b16 %v1908
        %v1920 = vunpack.c.h.b16 %v1908
        %v1921 = vpack.c.b16 %v1913, %v1913
        %v1922 = vpack.c.b16 %v1914, %v1914
        %v1923 = vpack.c.b16 %v1915, %v1915
        %v1924 = vpack.c.b16 %v1916, %v1916
        %v1925 = vpack.c.b16 %v1917, %v1917
        %v1926 = vpack.c.b16 %v1918, %v1918
        %v1927 = vpack.c.b16 %v1919, %v1919
        %v1928 = vpack.c.b16 %v1920, %v1920
        %1937 = vst [vmem:[%s334] sm:$0xf] %v1921
        %1938 = vst [vmem:[%s334 + $0x4] sm:$0xf] %v1922
        %1939 = vst [vmem:[%s334 + $0x8] sm:$0xf] %v1923
        %1940 = vst [vmem:[%s334 + $0xc] sm:$0xf] %v1924
        %1941 = vst [vmem:[%s334 + $0x10] sm:$0xf] %v1925
        %1942 = vst [vmem:[%s334 + $0x14] sm:$0xf] %v1926
        %1943 = vst [vmem:[%s334 + $0x18] sm:$0xf] %v1927
        %1944 = vst [vmem:[%s334 + $0x1c] sm:$0xf] %v1928
        %s1945 = sand.u32 %s183, 1
        %s1946 = scalar_lea.sflag [#allocation4], %s1945
        %s1947 = sand.u32 %s183, 1
        %s1948 = smul.addr %s1947, 32
        %s1949 = scalar_lea.vmem [#allocation3], %s1948
        // Predicated region
        $region57: #{tpu_custom_call.1} parent=39 // pred_check
          %p1950 = pneg %p193
        $region58: #{tpu_custom_call.1} parent=39 // pred_check_branch
          %1952 = sbr.rel (%p1950) target = $region60
        $region59: #{tpu_custom_call.1} parent=39 // pred_region
          %s1953 = smul.u32 8, %s24
          %s1955 = ssub.s32 512, 512
          %1956 = vsyncadd %s1946, %s1955
          %s1957 = smul.addr %s23, 32
          %s1958 = sadd.s32 %s1953, %s1957
          %s1959 = smul.addr %s1958, 64
          %s1960 = scalar_lea.hbm %s5, %s1959
          %s1961 = sshll.u32 %s1949, 4
          %s1962 = int_to_ptr.vmem [resolvable:$true] %s1961
          %1967 = dma.vmem_to_hbm [thread:$0]  %s1962, 512, %s1960, %s1946, 64, 64, 4
        $region60: #{tpu_custom_call.1} parent=39 // pred_fallthru
          _
      $region40: #{tpu_custom_call.1} parent=5 // pred_fallthru
        _
      %p1968 = scmp.le.s32.totalorder 2, %s14
      // Predicated region
      $region61: #{tpu_custom_call.1} parent=5 // pred_check
        %p1969 = pneg %p1968
      $region62: #{tpu_custom_call.1} parent=5 // pred_check_branch
        %1971 = sbr.rel (%p1969) target = $region64
      $region63: #{tpu_custom_call.1} parent=5 // pred_region
        %s1972 = ssub.s32 %s14, 2
        // Predicated region
        $region65: #{tpu_custom_call.1} parent=63 // pred_check
          %p1973 = pneg %p199
        $region66: #{tpu_custom_call.1} parent=63 // pred_check_branch
          %1975 = sbr.rel (%p1973) target = $region68
        $region67: #{tpu_custom_call.1} parent=63 // pred_region
          %s1976 = sand.u32 %s184, 1
          %s1977 = scalar_lea.sflag [#allocation4], %s1976
          %s1978 = sand.u32 %s184, 1
          %s1979 = smul.addr %s1978, 32
          %s1980 = scalar_lea.vmem [#allocation3], %s1979
          %1981 = dma.done %s1977, 512
        $region68: #{tpu_custom_call.1} parent=63 // pred_fallthru
          _
      $region64: #{tpu_custom_call.1} parent=5 // pred_fallthru
        _
    $region6: #{tpu_custom_call.1} parent=1 // loop_footer
      %s18 = sadd.s32 1, %s14
    $region7: #{tpu_custom_call.1} parent=1 // loop_footer_branch
      %13 = sbr.rel target = $region3
    $region8: #{tpu_custom_call.1} parent=1 // loop_exit
      _
    %1982 = vsyncpa [#allocation4], 1
    %s1983 = scalar_lea.sflag [#allocation4], 1
    %1984 = vsyncpa %s1983, 1

</llo_original>
